<compile_context>
chip_gen: v7x
topology: tpu7x:2x2x1
jax: 0.10.0
libtpu: 0.0.40
codegen_flags: <defaults>
</compile_context>

<pallas_src>
import functools

import jax
import jax.numpy as jnp
from jax.experimental import pallas as pl
from jax.experimental.pallas import tpu as pltpu


def _round_up(x, m):
    return (x + m - 1) // m * m


def _full_spec(shape):
    nd = len(shape)
    # *_: works for any grid arity (1-D heads grid, 2-D conv grid).
    return pl.BlockSpec(shape, lambda *_: (0,) * nd)


# ----------------------------------------------------------------------------
# Kernels
# ----------------------------------------------------------------------------
def _fused_heads_kernel(x_ref,
                        wcat_ref, bcat_ref,   # fused [w1 | wc | wa | wq], lane-padded
                        w2_ref, b2_ref,       # bbox MLP layer 2
                        w3_ref, b3_ref,       # bbox MLP layer 3
                        out_ref,              # lane-dense slab [logits|attrs|boxes|projq|pad]
                        *, hd, nc1, na, ch, out_w):
    x = x_ref[...]                                                   # (TM, Hd)

    # One MXU push for all four heads that consume x.
    y = jnp.dot(x, wcat_ref[...], preferred_element_type=jnp.float32) + bcat_ref[...]
    h1 = jnp.maximum(y[:, :hd], 0.0)                                 # bbox L1 (ReLU)
    logits = y[:, hd:hd + nc1]                                       # class_embed
    attrs = y[:, hd + nc1:hd + nc1 + na]                             # attribute_embed
    q = y[:, hd + nc1 + na:hd + nc1 + na + ch]                       # contrastive image proj

    # bbox MLP tail: relu(L2) -> L3 -> sigmoid
    h2 = jnp.maximum(
        jnp.dot(h1, w2_ref[...], preferred_element_type=jnp.float32) + b2_ref[...], 0.0)
    boxes = jax.nn.sigmoid(
        jnp.dot(h2, w3_ref[...], preferred_element_type=jnp.float32) + b3_ref[...])

    # F.normalize(q, dim=-1): q / max(||q||, 1e-12) == q * rsqrt(max(||q||^2, 1e-24))
    sumsq = jnp.sum(q * q, axis=-1, keepdims=True)
    projq = q * jax.lax.rsqrt(jnp.maximum(sumsq, 1e-24))

    head_w = nc1 + na + 4 + ch
    out_ref[:, 0:nc1] = logits
    out_ref[:, nc1:nc1 + na] = attrs
    out_ref[:, nc1 + na:nc1 + na + 4] = boxes
    out_ref[:, nc1 + na + 4:head_w] = projq
    if out_w > head_w:  # zero the lane padding (discarded by the wrapper)
        out_ref[:, head_w:out_w] = jnp.zeros((x.shape[0], out_w - head_w), jnp.float32)


def _conv1x1_kernel(x_ref, wt_ref, b_ref, o_ref):
    # x_ref block: (1, C, THW); wt: (Co, C); b: (Co, 1); o_ref block: (1, Co, THW)
    y = jnp.dot(wt_ref[...], x_ref[0], preferred_element_type=jnp.float32) + b_ref[...]
    o_ref[0] = y


# ----------------------------------------------------------------------------
# Wrappers
# ----------------------------------------------------------------------------
def fused_heads(hs_flat, params, *, tm=256):
    """hs_flat: (N, Hd) rows. Returns (logits, attrs, boxes, proj_queries)."""
    n, hd = hs_flat.shape
    nc1 = params["wc"].shape[1]
    na = params["wa"].shape[1]
    ch = params["wq"].shape[1]
    head_w = nc1 + na + 4 + ch
    out_w = _round_up(head_w, 128)            # lane-dense output slab width

    # Fuse every weight that consumes x into one (Hd, *) matrix, lane-padded.
    wcat = jnp.concatenate(
        [params["w1"], params["wc"], params["wa"], params["wq"]], axis=1)
    bcat = jnp.concatenate(
        [params["b1"], params["bc"], params["ba"], params["bq"]], axis=1)
    cat_pad = _round_up(wcat.shape[1], 128) - wcat.shape[1]
    if cat_pad:
        wcat = jnp.pad(wcat, ((0, 0), (0, cat_pad)))
        bcat = jnp.pad(bcat, ((0, 0), (0, cat_pad)))

    # Big row tiles; pad rows to a multiple of the tile (padded rows discarded).
    tm_eff = min(tm, _round_up(n, 8))
    n_pad = _round_up(n, tm_eff)
    x = hs_flat if n_pad == n else jnp.pad(hs_flat, ((0, n_pad - n), (0, 0)))

    kernel = functools.partial(_fused_heads_kernel,
                               hd=hd, nc1=nc1, na=na, ch=ch, out_w=out_w)
    weight_args = (wcat, bcat, params["w2"], params["b2"], params["w3"], params["b3"])

    slab = pl.pallas_call(
        kernel,
        out_shape=jax.ShapeDtypeStruct((n_pad, out_w), jnp.float32),
        grid_spec=pltpu.PrefetchScalarGridSpec(
            num_scalar_prefetch=0,
            grid=(n_pad // tm_eff,),
            in_specs=[pl.BlockSpec((tm_eff, hd), lambda i: (i, 0))]
                     + [_full_spec(w.shape) for w in weight_args],
            out_specs=pl.BlockSpec((tm_eff, out_w), lambda i: (i, 0)),
        ),
        compiler_params=pltpu.CompilerParams(dimension_semantics=("parallel",)),
    )(x, *weight_args)

    slab = slab[:n]
    logits = slab[:, :nc1]
    attrs = slab[:, nc1:nc1 + na]
    boxes = slab[:, nc1 + na:nc1 + na + 4]
    projq = slab[:, nc1 + na + 4:head_w]
    return logits, attrs, boxes, projq


def _pick_lane_tile(total, preferred):
    cand = (min(preferred, total) // 128) * 128
    while cand >= 128:
        if total % cand == 0:
            return cand
        cand -= 128
    return total


def conv1x1_nchw(x_nchw, w, b, *, thw=512):
    """1x1 conv (input_proj) on NCHW input with NO layout transposes.

    x_nchw: (B, C, H, W); w: (C, Co); b: (1, Co)  ->  (B, Co, H, W)
    The kernel computes w.T @ x per (batch, HW-tile), so H*W stays on lanes and
    the output is written directly in (B, Co, H*W) order.
    """
    bsz, c, h, wd = x_nchw.shape
    co = w.shape[1]
    hw = h * wd
    t = _pick_lane_tile(hw, thw)
    x = x_nchw.reshape(bsz, c, hw)             # free reshape (contiguous)
    wt = jnp.transpose(w)                      # (Co, C)  tiny
    bc = jnp.reshape(b, (co, 1))               # (Co, 1)

    out = pl.pallas_call(
        _conv1x1_kernel,
        out_shape=jax.ShapeDtypeStruct((bsz, co, hw), jnp.float32),
        grid_spec=pltpu.PrefetchScalarGridSpec(
            num_scalar_prefetch=0,
            grid=(bsz, hw // t),
            in_specs=[pl.BlockSpec((1, c, t), lambda bi, ji: (bi, 0, ji)),
                      _full_spec(wt.shape), _full_spec(bc.shape)],
            out_specs=pl.BlockSpec((1, co, t), lambda bi, ji: (bi, 0, ji)),
        ),
        compiler_params=pltpu.CompilerParams(
            dimension_semantics=("parallel", "parallel")),
    )(x, wt, bc)
    return out.reshape(bsz, co, h, wd)


def text_proj_normalized(text_sbh, w, b):
    """contrastive_align text proj + L2 norm + transpose(0,1). text: (S, B, Hd).

    S*B is tiny; per the perf review this stays in plain XLA (a standalone
    gridless pallas_call here is pure launch/DMA overhead).
    """
    y = text_sbh @ w + b
    nrm = jnp.sqrt(jnp.sum(y * y, axis=-1, keepdims=True))
    y = y / jnp.maximum(nrm, 1e-12)
    return jnp.transpose(y, (1, 0, 2))


# ----------------------------------------------------------------------------
# ADETR decode / encode heads
# ----------------------------------------------------------------------------
def adetr_decode(hs, text_memory, params, *, aux_loss=True, tm=256):
    """hs: (L, B, Q, Hd); text_memory: (S, B, Hd).  Mirrors encode_and_save=False."""
    L, B, Q, Hd = hs.shape
    hs_flat = hs.reshape(L * B * Q, Hd)
    logits, attrs, boxes, projq = fused_heads(hs_flat, params, tm=tm)

    nc1 = logits.shape[-1]
    na = attrs.shape[-1]
    ch = projq.shape[-1]
    outputs_class = logits.reshape(L, B, Q, nc1)
    outputs_attr = attrs.reshape(L, B, Q, na)
    outputs_coord = boxes.reshape(L, B, Q, 4)
    proj_queries = projq.reshape(L, B, Q, ch)
    proj_tokens = text_proj_normalized(text_memory, params["wt"], params["bt"])

    out = {
        "pred_logits": outputs_class[-1],
        "pred_boxes": outputs_coord[-1],
        "pred_attributes": outputs_attr[-1],
        "proj_queries": proj_queries[-1],
        "proj_tokens": proj_tokens,
    }
    if aux_loss:
        out["aux_outputs"] = [
            {"pred_logits": outputs_class[i], "pred_boxes": outputs_coord[i],
             "pred_attributes": outputs_attr[i], "proj_queries": proj_queries[i],
             "proj_tokens": proj_tokens}
            for i in range(L - 1)
        ]
    return out


def adetr_encode_input_proj(src_nchw, params, *, thw=512):
    """The ADETR-owned compute on the encode path: input_proj(src)."""
    return conv1x1_nchw(src_nchw, params["wproj"], params["bproj"], thw=thw)


# ----------------------------------------------------------------------------
# Deterministic parameter init & reference check
# ----------------------------------------------------------------------------
def make_params(key, *, hidden_dim, num_classes, num_attributes,
                contrastive_hdim, backbone_channels):
    ks = jax.random.split(key, 16)

    def lin(k, fan_in, fan_out):
        kw, kb = jax.random.split(k)
        w = jax.random.normal(kw, (fan_in, fan_out), jnp.float32) * (1.0 / jnp.sqrt(fan_in))
        b = jax.random.normal(kb, (1, fan_out), jnp.float32) * 0.01
        return w, b

    p = {}
    p["wc"], p["bc"] = lin(ks[0], hidden_dim, num_classes + 1)
    p["wa"], p["ba"] = lin(ks[1], hidden_dim, num_attributes)
    p["w1"], p["b1"] = lin(ks[2], hidden_dim, hidden_dim)
    p["w2"], p["b2"] = lin(ks[3], hidden_dim, hidden_dim)
    p["w3"], p["b3"] = lin(ks[4], hidden_dim, 4)
    p["wq"], p["bq"] = lin(ks[5], hidden_dim, contrastive_hdim)
    p["wt"], p["bt"] = lin(ks[6], hidden_dim, contrastive_hdim)
    p["wproj"], p["bproj"] = lin(ks[7], backbone_channels, hidden_dim)
    return p


def reference_decode(hs, text_memory, p):
    def norm(x):
        return x / jnp.maximum(jnp.linalg.norm(x, axis=-1, keepdims=True), 1e-12)
    logits = hs @ p["wc"] + p["bc"]
    attrs = hs @ p["wa"] + p["ba"]
    h1 = jax.nn.relu(hs @ p["w1"] + p["b1"])
    h2 = jax.nn.relu(h1 @ p["w2"] + p["b2"])
    boxes = jax.nn.sigmoid(h2 @ p["w3"] + p["b3"])
    projq = norm(hs @ p["wq"] + p["bq"])
    projt = jnp.transpose(norm(text_memory @ p["wt"] + p["bt"]), (1, 0, 2))
    return logits, attrs, boxes, projq, projt


if __name__ == "__main__":
    # Keep the pure-JAX reference matmuls in full f32 so it matches the kernel.
    jax.config.update("jax_default_matmul_precision", "highest")

    # small shapes
    L = 3            # decoder layers
    B = 2            # batch
    Q = 8            # num_queries
    Hd = 32          # transformer.d_model
    NUM_CLASSES = 16
    NUM_ATTRS = 10
    CH = 64          # contrastive_hdim
    S = 6            # text length
    C_BB = 4         # backbone.num_channels
    HS = WS = 16     # feature-map spatial

    key = jax.random.PRNGKey(0)
    kp, khs, ktxt, ksrc = jax.random.split(key, 4)
    params = make_params(kp, hidden_dim=Hd, num_classes=NUM_CLASSES,
                         num_attributes=NUM_ATTRS, contrastive_hdim=CH,
                         backbone_channels=C_BB)

    hs = jax.random.normal(khs, (L, B, Q, Hd), jnp.float32)           # transformer output
    text_memory = jax.random.normal(ktxt, (S, B, Hd), jnp.float32)    # text encoder output
    src = jax.random.normal(ksrc, (B, C_BB, HS, WS), jnp.float32)     # backbone feature (NCHW)

    # decode branch (encode_and_save=False): prediction heads
    out = adetr_decode(hs, text_memory, params, aux_loss=True, tm=256)
    # encode branch: ADETR-owned input_proj (1x1 conv)
    proj_feat = adetr_encode_input_proj(src, params)

    jax.block_until_ready(out)
    jax.block_until_ready(proj_feat)

    # correctness vs. pure-JAX reference
    ref_logits, ref_attrs, ref_boxes, ref_projq, ref_projt = reference_decode(
        hs, text_memory, params)
    ref_feat = jnp.transpose(
        jnp.transpose(src, (0, 2, 3, 1)) @ params["wproj"] + params["bproj"],
        (0, 3, 1, 2))

    checks = [
        jnp.allclose(out["pred_logits"], ref_logits[-1], atol=1e-4),
        jnp.allclose(out["pred_attributes"], ref_attrs[-1], atol=1e-4),
        jnp.allclose(out["pred_boxes"], ref_boxes[-1], atol=1e-4),
        jnp.allclose(out["proj_queries"], ref_projq[-1], atol=1e-4),
        jnp.allclose(out["proj_tokens"], ref_projt, atol=1e-4),
        jnp.allclose(out["aux_outputs"][0]["pred_logits"], ref_logits[0], atol=1e-4),
        jnp.allclose(proj_feat, ref_feat, atol=1e-4),
    ]
    assert all(bool(c) for c in checks), "Pallas output mismatch vs reference"
    print("KERNEL_OK")
</pallas_src>

<mosaic_0001>
module attributes {stable_mosaic.version = 11 : i64} {
  func.func @_fused_heads_kernel(%arg0: i32, %arg1: memref<48x32xf32, #tpu.memory_space<vmem>>, %arg2: memref<32x128xf32, #tpu.memory_space<vmem>>, %arg3: memref<1x128xf32, #tpu.memory_space<vmem>>, %arg4: memref<32x32xf32, #tpu.memory_space<vmem>>, %arg5: memref<1x32xf32, #tpu.memory_space<vmem>>, %arg6: memref<32x4xf32, #tpu.memory_space<vmem>>, %arg7: memref<1x4xf32, #tpu.memory_space<vmem>>, %arg8: memref<48x128xf32, #tpu.memory_space<vmem>>) attributes {dimension_semantics = [#tpu.dimension_semantics<parallel>], iteration_bounds = array<i64: 1>, scalar_prefetch = 0 : i64, scratch_operands = 0 : i64, tpu.core_type = #tpu.core_type<tc>, window_params = [{transform_indices = @transform_0, window_bounds = array<i64: 48, 32>}, {pipeline_mode = #tpu.pipeline_mode<synchronous>, transform_indices = @transform_1, window_bounds = array<i64: 32, 128>}, {pipeline_mode = #tpu.pipeline_mode<synchronous>, transform_indices = @transform_2, window_bounds = array<i64: 1, 128>}, {pipeline_mode = #tpu.pipeline_mode<synchronous>, transform_indices = @transform_3, window_bounds = array<i64: 32, 32>}, {pipeline_mode = #tpu.pipeline_mode<synchronous>, transform_indices = @transform_4, window_bounds = array<i64: 1, 32>}, {pipeline_mode = #tpu.pipeline_mode<synchronous>, transform_indices = @transform_5, window_bounds = array<i64: 32, 4>}, {pipeline_mode = #tpu.pipeline_mode<synchronous>, transform_indices = @transform_6, window_bounds = array<i64: 1, 4>}, {transform_indices = @transform_7, window_bounds = array<i64: 48, 128>}]} {
    %c0 = arith.constant 0 : index
    %c0_0 = arith.constant 0 : index
    %0 = vector.load %arg1[%c0, %c0_0] : memref<48x32xf32, #tpu.memory_space<vmem>>, vector<48x32xf32>
    %c0_1 = arith.constant 0 : index
    %c0_2 = arith.constant 0 : index
    %1 = vector.load %arg2[%c0_1, %c0_2] : memref<32x128xf32, #tpu.memory_space<vmem>>, vector<32x128xf32>
    %cst = arith.constant dense<0.000000e+00> : vector<48x128xf32>
    %2 = tpu.matmul %0, %1, %cst {dimension_numbers = #tpu.dot_dimension_numbers<[1], [0], [0], [1], [0, 0, 1, 1], [], []>, precision = #tpu.contract_precision<fp32>} : vector<48x32xf32>, vector<32x128xf32>, vector<48x128xf32> -> vector<48x128xf32>
    %c0_3 = arith.constant 0 : index
    %c0_4 = arith.constant 0 : index
    %3 = vector.load %arg3[%c0_3, %c0_4] : memref<1x128xf32, #tpu.memory_space<vmem>>, vector<1x128xf32>
    %4 = vector.broadcast %3 : vector<1x128xf32> to vector<48x128xf32>
    %5 = arith.addf %2, %4 : vector<48x128xf32>
    %6 = vector.extract_strided_slice %5 {offsets = [0, 0], sizes = [48, 32], strides = [1, 1]} : vector<48x128xf32> to vector<48x32xf32>
    %cst_5 = arith.constant 0.000000e+00 : f32
    %7 = vector.broadcast %cst_5 : f32 to vector<48x32xf32>
    %8 = arith.maximumf %6, %7 : vector<48x32xf32>
    %9 = vector.extract_strided_slice %5 {offsets = [0, 32], sizes = [48, 17], strides = [1, 1]} : vector<48x128xf32> to vector<48x17xf32>
    %10 = vector.extract_strided_slice %5 {offsets = [0, 49], sizes = [48, 10], strides = [1, 1]} : vector<48x128xf32> to vector<48x10xf32>
    %11 = vector.extract_strided_slice %5 {offsets = [0, 59], sizes = [48, 64], strides = [1, 1]} : vector<48x128xf32> to vector<48x64xf32>
    %c0_6 = arith.constant 0 : index
    %c0_7 = arith.constant 0 : index
    %12 = vector.load %arg4[%c0_6, %c0_7] : memref<32x32xf32, #tpu.memory_space<vmem>>, vector<32x32xf32>
    %cst_8 = arith.constant dense<0.000000e+00> : vector<48x32xf32>
    %13 = tpu.matmul %8, %12, %cst_8 {dimension_numbers = #tpu.dot_dimension_numbers<[1], [0], [0], [1], [0, 0, 1, 1], [], []>, precision = #tpu.contract_precision<fp32>} : vector<48x32xf32>, vector<32x32xf32>, vector<48x32xf32> -> vector<48x32xf32>
    %c0_9 = arith.constant 0 : index
    %c0_10 = arith.constant 0 : index
    %14 = vector.load %arg5[%c0_9, %c0_10] : memref<1x32xf32, #tpu.memory_space<vmem>>, vector<1x32xf32>
    %15 = vector.broadcast %14 : vector<1x32xf32> to vector<48x32xf32>
    %16 = arith.addf %13, %15 : vector<48x32xf32>
    %cst_11 = arith.constant 0.000000e+00 : f32
    %17 = vector.broadcast %cst_11 : f32 to vector<48x32xf32>
    %18 = arith.maximumf %16, %17 : vector<48x32xf32>
    %c0_12 = arith.constant 0 : index
    %c0_13 = arith.constant 0 : index
    %19 = vector.load %arg6[%c0_12, %c0_13] : memref<32x4xf32, #tpu.memory_space<vmem>>, vector<32x4xf32>
    %cst_14 = arith.constant dense<0.000000e+00> : vector<48x4xf32>
    %20 = tpu.matmul %18, %19, %cst_14 {dimension_numbers = #tpu.dot_dimension_numbers<[1], [0], [0], [1], [0, 0, 1, 1], [], []>, precision = #tpu.contract_precision<fp32>} : vector<48x32xf32>, vector<32x4xf32>, vector<48x4xf32> -> vector<48x4xf32>
    %c0_15 = arith.constant 0 : index
    %c0_16 = arith.constant 0 : index
    %21 = vector.load %arg7[%c0_15, %c0_16] : memref<1x4xf32, #tpu.memory_space<vmem>>, vector<1x4xf32>
    %22 = vector.broadcast %21 : vector<1x4xf32> to vector<48x4xf32>
    %23 = arith.addf %20, %22 : vector<48x4xf32>
    %24 = arith.negf %23 : vector<48x4xf32>
    %25 = math.exp %24 : vector<48x4xf32>
    %cst_17 = arith.constant 1.000000e+00 : f32
    %26 = vector.broadcast %cst_17 : f32 to vector<48x4xf32>
    %27 = arith.addf %26, %25 : vector<48x4xf32>
    %28 = arith.divf %26, %27 : vector<48x4xf32>
    %29 = arith.mulf %11, %11 : vector<48x64xf32>
    %cst_18 = arith.constant dense<0.000000e+00> : vector<48xf32>
    %30 = vector.multi_reduction <add>, %29, %cst_18 [1] : vector<48x64xf32> to vector<48xf32>
    %31 = vector.shape_cast %30 : vector<48xf32> to vector<48x1xf32>
    %cst_19 = arith.constant 1.000000e-24 : f32
    %32 = vector.broadcast %cst_19 : f32 to vector<48x1xf32>
    %33 = arith.maximumf %31, %32 : vector<48x1xf32>
    %34 = math.rsqrt %33 : vector<48x1xf32>
    %35 = vector.broadcast %34 : vector<48x1xf32> to vector<48x64xf32>
    %36 = arith.mulf %11, %35 : vector<48x64xf32>
    %c0_20 = arith.constant 0 : index
    %c0_21 = arith.constant 0 : index
    %37 = vector.load %arg8[%c0_20, %c0_21] : memref<48x128xf32, #tpu.memory_space<vmem>>, vector<48x17xf32>
    tpu.vector_store %arg8[%c0_20, %c0_21], %9 {strides = array<i32>} : memref<48x128xf32, #tpu.memory_space<vmem>>, vector<48x17xf32>,
    %c0_22 = arith.constant 0 : index
    %c17 = arith.constant 17 : index
    %38 = vector.load %arg8[%c0_22, %c17] : memref<48x128xf32, #tpu.memory_space<vmem>>, vector<48x10xf32>
    tpu.vector_store %arg8[%c0_22, %c17], %10 {strides = array<i32>} : memref<48x128xf32, #tpu.memory_space<vmem>>, vector<48x10xf32>,
    %c0_23 = arith.constant 0 : index
    %c27 = arith.constant 27 : index
    %39 = vector.load %arg8[%c0_23, %c27] : memref<48x128xf32, #tpu.memory_space<vmem>>, vector<48x4xf32>
    tpu.vector_store %arg8[%c0_23, %c27], %28 {strides = array<i32>} : memref<48x128xf32, #tpu.memory_space<vmem>>, vector<48x4xf32>,
    %c0_24 = arith.constant 0 : index
    %c31 = arith.constant 31 : index
    %40 = vector.load %arg8[%c0_24, %c31] : memref<48x128xf32, #tpu.memory_space<vmem>>, vector<48x64xf32>
    tpu.vector_store %arg8[%c0_24, %c31], %36 {strides = array<i32>} : memref<48x128xf32, #tpu.memory_space<vmem>>, vector<48x64xf32>,
    %cst_25 = arith.constant 0.000000e+00 : f32
    %41 = vector.broadcast %cst_25 : f32 to vector<48x33xf32>
    %c0_26 = arith.constant 0 : index
    %c95 = arith.constant 95 : index
    %42 = vector.load %arg8[%c0_26, %c95] : memref<48x128xf32, #tpu.memory_space<vmem>>, vector<48x33xf32>
    tpu.vector_store %arg8[%c0_26, %c95], %41 {strides = array<i32>} : memref<48x128xf32, #tpu.memory_space<vmem>>, vector<48x33xf32>,
    return
  }
  func.func @transform_0(%arg0: i32) -> (i32, i32) {
    %c0_i32 = arith.constant 0 : i32
    %c0_i32_0 = arith.constant 0 : i32
    return %arg0, %c0_i32 : i32, i32
  }
  func.func @transform_1(%arg0: i32) -> (i32, i32) {
    %c0_i32 = arith.constant 0 : i32
    %c0_i32_0 = arith.constant 0 : i32
    %c0_i32_1 = arith.constant 0 : i32
    return %c0_i32, %c0_i32_0 : i32, i32
  }
  func.func @transform_2(%arg0: i32) -> (i32, i32) {
    %c0_i32 = arith.constant 0 : i32
    %c0_i32_0 = arith.constant 0 : i32
    %c0_i32_1 = arith.constant 0 : i32
    return %c0_i32, %c0_i32_0 : i32, i32
  }
  func.func @transform_3(%arg0: i32) -> (i32, i32) {
    %c0_i32 = arith.constant 0 : i32
    %c0_i32_0 = arith.constant 0 : i32
    %c0_i32_1 = arith.constant 0 : i32
    return %c0_i32, %c0_i32_0 : i32, i32
  }
  func.func @transform_4(%arg0: i32) -> (i32, i32) {
    %c0_i32 = arith.constant 0 : i32
    %c0_i32_0 = arith.constant 0 : i32
    %c0_i32_1 = arith.constant 0 : i32
    return %c0_i32, %c0_i32_0 : i32, i32
  }
  func.func @transform_5(%arg0: i32) -> (i32, i32) {
    %c0_i32 = arith.constant 0 : i32
    %c0_i32_0 = arith.constant 0 : i32
    %c0_i32_1 = arith.constant 0 : i32
    return %c0_i32, %c0_i32_0 : i32, i32
  }
  func.func @transform_6(%arg0: i32) -> (i32, i32) {
    %c0_i32 = arith.constant 0 : i32
    %c0_i32_0 = arith.constant 0 : i32
    %c0_i32_1 = arith.constant 0 : i32
    return %c0_i32, %c0_i32_0 : i32, i32
  }
  func.func @transform_7(%arg0: i32) -> (i32, i32) {
    %c0_i32 = arith.constant 0 : i32
    %c0_i32_0 = arith.constant 0 : i32
    return %arg0, %c0_i32 : i32, i32
  }
}

</mosaic_0001>

<llo_original>
// kernel: tpu_custom_call.1
$region0: #{tpu_custom_call.1}
  #allocation0 [shape = 'u32[]', space=smem, size = 0x4, offset = 0x4, fixed_abs, tag = 'smem constant byte address 0x4 - core index']
  #allocation1 [shape = 'u32[144,128]{1,0:T(1,128)}', space=vmem, size = 0x12000, scoped, tag = 'internal scratch']
  %s0 = inlined_call_operand.vmem [shape: f32[48,32], index: 0, kind: input, shape index: {}]
  %s1 = inlined_call_operand.vmem [shape: f32[32,128], index: 1, kind: input, shape index: {}]
  %s2 = inlined_call_operand.vmem [shape: f32[1,128], index: 2, kind: input, shape index: {}]
  %s3 = inlined_call_operand.vmem [shape: f32[32,32], index: 3, kind: input, shape index: {}]
  %s4 = inlined_call_operand.vmem [shape: f32[1,32], index: 4, kind: input, shape index: {}]
  %s5 = inlined_call_operand.vmem [shape: f32[32,4], index: 5, kind: input, shape index: {}]
  %s6 = inlined_call_operand.vmem [shape: f32[1,4], index: 6, kind: input, shape index: {}]
  %s7 = inlined_call_operand.hbm [shape: f32[48,128], index: 7, kind: output, shape index: {}]
  %s8 = sld [smem:[#allocation0]]
  $region38: #{tpu_custom_call.1} parent=0
    _
  %s10 = ssub.s32 1, %s8
  %s11 = scalar_select 0, %s10, %s8
  $region1: #{tpu_custom_call.1} parent=0
    #allocation2 [shape = 'u8[24576]{0}', space=vmem, size = 0x6000, scoped, tag = 'output window, operand 0, single buffered']
    #allocation3 [shape = 's32[1]{0}', space=sflag, size = 0x4, scoped, tag = 'scoped memory for tpu_custom_call.1']
    %12 = vsyncpa [#allocation3], 0
    // Predicated region
    $region2: #{tpu_custom_call.1} parent=1 // pred_check
      _
    $region3: #{tpu_custom_call.1} parent=1 // pred_check_branch
      %14 = sbr.rel (0) target = $region5
    $region4: #{tpu_custom_call.1} parent=1 // pred_region
      _
    $region5: #{tpu_custom_call.1} parent=1 // pred_fallthru
      _
    // Predicated region
    $region6: #{tpu_custom_call.1} parent=1 // pred_check
      _
    $region7: #{tpu_custom_call.1} parent=1 // pred_check_branch
      %16 = sbr.rel (0) target = $region9
    $region8: #{tpu_custom_call.1} parent=1 // pred_region
      _
    $region9: #{tpu_custom_call.1} parent=1 // pred_fallthru
      _
    // Predicated region
    $region10: #{tpu_custom_call.1} parent=1 // pred_check
      _
    $region11: #{tpu_custom_call.1} parent=1 // pred_check_branch
      %18 = sbr.rel (0) target = $region13
    $region12: #{tpu_custom_call.1} parent=1 // pred_region
      _
    $region13: #{tpu_custom_call.1} parent=1 // pred_fallthru
      _
    // Predicated region
    $region14: #{tpu_custom_call.1} parent=1 // pred_check
      _
    $region15: #{tpu_custom_call.1} parent=1 // pred_check_branch
      %20 = sbr.rel (0) target = $region17
    $region16: #{tpu_custom_call.1} parent=1 // pred_region
      _
    $region17: #{tpu_custom_call.1} parent=1 // pred_fallthru
      _
    // Predicated region
    $region18: #{tpu_custom_call.1} parent=1 // pred_check
      _
    $region19: #{tpu_custom_call.1} parent=1 // pred_check_branch
      %22 = sbr.rel (0) target = $region21
    $region20: #{tpu_custom_call.1} parent=1 // pred_region
      _
    $region21: #{tpu_custom_call.1} parent=1 // pred_fallthru
      _
    // Predicated region
    $region22: #{tpu_custom_call.1} parent=1 // pred_check
      _
    $region23: #{tpu_custom_call.1} parent=1 // pred_check_branch
      %24 = sbr.rel (0) target = $region25
    $region24: #{tpu_custom_call.1} parent=1 // pred_region
      _
    $region25: #{tpu_custom_call.1} parent=1 // pred_fallthru
      _
    // Predicated region
    $region26: #{tpu_custom_call.1} parent=1 // pred_check
      _
    $region27: #{tpu_custom_call.1} parent=1 // pred_check_branch
      %26 = sbr.rel (0) target = $region29
    $region28: #{tpu_custom_call.1} parent=1 // pred_region
      _
    $region29: #{tpu_custom_call.1} parent=1 // pred_fallthru
      _
    %v27 = vld [vmem:[%s0] sm:$0xff]
    %v28 = vld [vmem:[%s0 + $0x8] sm:$0xff]
    %v29 = vld [vmem:[%s0 + $0x10] sm:$0xff]
    %v30 = vld [vmem:[%s0 + $0x18] sm:$0xff]
    %v31 = vld [vmem:[%s0 + $0x20] sm:$0xff]
    %v32 = vld [vmem:[%s0 + $0x28] sm:$0xff]
    %v33 = vld [vmem:[%s1] sm:$0xff]
    %v34 = vld [vmem:[%s1 + $0x8] sm:$0xff]
    %v35 = vld [vmem:[%s1 + $0x10] sm:$0xff]
    %v36 = vld [vmem:[%s1 + $0x18] sm:$0xff]
    %v37 = vld [vmem:[%s2] sm:$0x1]
    %v39 = vlaneseq
    %v40 = vshrl.u32 %v39, 7
    %v41 = vsub.s32 0, %v40
    %v42 = vrot.slane %v37, %v41
    %vm44 = vcmask 261120
    %v46 = vsel %vm44, %v27, 0
    %v49 = vsel %vm44, %v28, 0
    %v52 = vsel %vm44, %v29, 0
    %v55 = vsel %vm44, %v30, 0
    %v58 = vsel %vm44, %v31, 0
    %v61 = vsel %vm44, %v32, 0
    %63 = vmatprep.subr.mxu0 0.0
    %v64 = vand.u32 %v33, 4294901760
    %65 = vmatpush1.msra.mxu0 %v64
    %66 = vmatprep.subr.mxu0 0.0
    %v67 = vand.u32 %v34, 4294901760
    %68 = vmatpush1.msra.mxu0 %v67
    %69 = vmatprep.subr.mxu0 0.0
    %v70 = vand.u32 %v35, 4294901760
    %71 = vmatpush1.msra.mxu0 %v70
    %72 = vmatprep.subr.mxu0 0.0
    %v73 = vand.u32 %v36, 4294901760
    %74 = vmatpush1.msra.mxu0 %v73
    %75 = vmatprep.subr.mxu0 0.0
    %76 = vmatpush1.msra.mxu0 0.0
    %77 = vmatprep.subr.mxu0 0.0
    %78 = vmatpush1.msra.mxu0 0.0
    %79 = vmatprep.subr.mxu0 0.0
    %80 = vmatpush1.msra.mxu0 0.0
    %81 = vmatprep.subr.mxu0 0.0
    %82 = vmatpush1.msra.mxu0 0.0
    %83 = vmatprep.subr.mxu0 0.0
    %84 = vmatpush1.msra.mxu0 0.0
    %85 = vmatprep.subr.mxu0 0.0
    %86 = vmatpush1.msra.mxu0 0.0
    %87 = vmatprep.subr.mxu0 0.0
    %88 = vmatpush1.msra.mxu0 0.0
    %89 = vmatprep.subr.mxu0 0.0
    %90 = vmatpush1.msra.mxu0 0.0
    %91 = vmatprep.subr.mxu0 0.0
    %92 = vmatpush1.msra.mxu0 0.0
    %93 = vmatprep.subr.mxu0 0.0
    %94 = vmatpush1.msra.mxu0 0.0
    %95 = vmatprep.subr.mxu0 0.0
    %96 = vmatpush1.msra.mxu0 0.0
    %97 = vmatprep.subr.mxu0 0.0
    %98 = vmatpush1.msra.mxu0 0.0
    %99 = vmatprep.subr.mxu0 0.0
    %100 = vmatpush1.msra.mxu0 0.0
    %101 = vmatprep.subr.mxu0 0.0
    %102 = vmatpush1.msra.mxu0 0.0
    %103 = vmatprep.subr.mxu0 0.0
    %104 = vmatpush1.msra.mxu0 0.0
    %105 = vmatprep.subr.mxu0 0.0
    %106 = vmatpush1.msra.mxu0 0.0
    %107 = vmatprep.subr.mxu0 0.0
    %108 = vmatpush1.msra.mxu0 0.0
    %109 = vmatprep.subr.mxu0 0.0
    %110 = vmatpush1.msra.mxu0 0.0
    %111 = vmatprep.subr.mxu0 0.0
    %112 = vmatpush1.msra.mxu0 0.0
    %113 = vmatprep.subr.mxu0 0.0
    %114 = vmatpush1.msra.mxu0 0.0
    %115 = vmatprep.subr.mxu0 0.0
    %116 = vmatpush1.msra.mxu0 0.0
    %117 = vmatprep.subr.mxu0 0.0
    %118 = vmatpush1.msra.mxu0 0.0
    %119 = vmatprep.subr.mxu0 0.0
    %120 = vmatpush1.msra.mxu0 0.0
    %121 = vmatprep.subr.mxu0 0.0
    %122 = vmatpush1.msra.mxu0 0.0
    %123 = vmatprep.subr.mxu0 0.0
    %124 = vmatpush1.msra.mxu0 0.0
    %125 = vmatprep.subr.mxu0 0.0
    %126 = vmatpush1.msra.mxu0 0.0
    %127 = vmatprep.subr.mxu0 0.0
    %128 = vmatpush1.msra.mxu0 0.0
    %129 = vmatprep.subr.mxu0 0.0
    %130 = vmatpush1.msra.mxu0 0.0
    %131 = vmatprep.mubr.f32.mxu0 0.0
    %v132 = vand.u32 %v46, 4294901760
    %v133 = vsub.f32 %v46, %v132
    %v134 = vand.u32 %v133, 4294901760
    %v135 = vsub.f32 %v133, %v134
    %v136 = vand.u32 %v135, 4294901760
    %137 = vmatmul.mubr.f32.gmra.mrb[0].mxu0 %v136
    %v138 = vpop.f32.mrb[0].mxu0
    %v139 = vadd.f32 %v42, %v138
    %v140 = vpop.f32.mrb[0].mxu0
    %141 = vmatprep.mubr.f32.mxu0 0.0
    %v142 = vand.u32 %v49, 4294901760
    %v143 = vsub.f32 %v49, %v142
    %v144 = vand.u32 %v143, 4294901760
    %v145 = vsub.f32 %v143, %v144
    %v146 = vand.u32 %v145, 4294901760
    %147 = vmatmul.mubr.f32.gmra.mrb[0].mxu0 %v146
    %v148 = vpop.f32.mrb[0].mxu0
    %v149 = vadd.f32 %v42, %v148
    %v150 = vpop.f32.mrb[0].mxu0
    %151 = vmatprep.mubr.f32.mxu0 0.0
    %v152 = vand.u32 %v52, 4294901760
    %v153 = vsub.f32 %v52, %v152
    %v154 = vand.u32 %v153, 4294901760
    %v155 = vsub.f32 %v153, %v154
    %v156 = vand.u32 %v155, 4294901760
    %157 = vmatmul.mubr.f32.gmra.mrb[0].mxu0 %v156
    %v158 = vpop.f32.mrb[0].mxu0
    %v159 = vadd.f32 %v42, %v158
    %v160 = vpop.f32.mrb[0].mxu0
    %161 = vmatprep.mubr.f32.mxu0 0.0
    %v162 = vand.u32 %v55, 4294901760
    %v163 = vsub.f32 %v55, %v162
    %v164 = vand.u32 %v163, 4294901760
    %v165 = vsub.f32 %v163, %v164
    %v166 = vand.u32 %v165, 4294901760
    %167 = vmatmul.mubr.f32.gmra.mrb[0].mxu0 %v166
    %v168 = vpop.f32.mrb[0].mxu0
    %v169 = vadd.f32 %v42, %v168
    %v170 = vpop.f32.mrb[0].mxu0
    %171 = vmatprep.mubr.f32.mxu0 0.0
    %v172 = vand.u32 %v58, 4294901760
    %v173 = vsub.f32 %v58, %v172
    %v174 = vand.u32 %v173, 4294901760
    %v175 = vsub.f32 %v173, %v174
    %v176 = vand.u32 %v175, 4294901760
    %177 = vmatmul.mubr.f32.gmra.mrb[0].mxu0 %v176
    %v178 = vpop.f32.mrb[0].mxu0
    %v179 = vadd.f32 %v42, %v178
    %v180 = vpop.f32.mrb[0].mxu0
    %181 = vmatprep.mubr.f32.mxu0 0.0
    %v182 = vand.u32 %v61, 4294901760
    %v183 = vsub.f32 %v61, %v182
    %v184 = vand.u32 %v183, 4294901760
    %v185 = vsub.f32 %v183, %v184
    %v186 = vand.u32 %v185, 4294901760
    %187 = vmatmul.mubr.f32.gmra.mrb[0].mxu0 %v186
    %v188 = vpop.f32.mrb[0].mxu0
    %v189 = vadd.f32 %v42, %v188
    %v190 = vpop.f32.mrb[0].mxu0
    %191 = vdwg.mxu0
    %192 = vmatprep.subr.mxu0 0.0
    %v193 = vand.u32 %v33, 4294901760
    %v194 = vsub.f32 %v33, %v193
    %v195 = vand.u32 %v194, 4294901760
    %v196 = vsub.f32 %v194, %v195
    %v197 = vand.u32 %v196, 4294901760
    %198 = vmatpush1.msra.mxu0 %v197
    %199 = vmatprep.subr.mxu0 0.0
    %v200 = vand.u32 %v34, 4294901760
    %v201 = vsub.f32 %v34, %v200
    %v202 = vand.u32 %v201, 4294901760
    %v203 = vsub.f32 %v201, %v202
    %v204 = vand.u32 %v203, 4294901760
    %205 = vmatpush1.msra.mxu0 %v204
    %206 = vmatprep.subr.mxu0 0.0
    %v207 = vand.u32 %v35, 4294901760
    %v208 = vsub.f32 %v35, %v207
    %v209 = vand.u32 %v208, 4294901760
    %v210 = vsub.f32 %v208, %v209
    %v211 = vand.u32 %v210, 4294901760
    %212 = vmatpush1.msra.mxu0 %v211
    %213 = vmatprep.subr.mxu0 0.0
    %v214 = vand.u32 %v36, 4294901760
    %v215 = vsub.f32 %v36, %v214
    %v216 = vand.u32 %v215, 4294901760
    %v217 = vsub.f32 %v215, %v216
    %v218 = vand.u32 %v217, 4294901760
    %219 = vmatpush1.msra.mxu0 %v218
    %220 = vmatprep.subr.mxu0 0.0
    %221 = vmatpush1.msra.mxu0 0.0
    %222 = vmatprep.subr.mxu0 0.0
    %223 = vmatpush1.msra.mxu0 0.0
    %224 = vmatprep.subr.mxu0 0.0
    %225 = vmatpush1.msra.mxu0 0.0
    %226 = vmatprep.subr.mxu0 0.0
    %227 = vmatpush1.msra.mxu0 0.0
    %228 = vmatprep.subr.mxu0 0.0
    %229 = vmatpush1.msra.mxu0 0.0
    %230 = vmatprep.subr.mxu0 0.0
    %231 = vmatpush1.msra.mxu0 0.0
    %232 = vmatprep.subr.mxu0 0.0
    %233 = vmatpush1.msra.mxu0 0.0
    %234 = vmatprep.subr.mxu0 0.0
    %235 = vmatpush1.msra.mxu0 0.0
    %236 = vmatprep.subr.mxu0 0.0
    %237 = vmatpush1.msra.mxu0 0.0
    %238 = vmatprep.subr.mxu0 0.0
    %239 = vmatpush1.msra.mxu0 0.0
    %240 = vmatprep.subr.mxu0 0.0
    %241 = vmatpush1.msra.mxu0 0.0
    %242 = vmatprep.subr.mxu0 0.0
    %243 = vmatpush1.msra.mxu0 0.0
    %244 = vmatprep.subr.mxu0 0.0
    %245 = vmatpush1.msra.mxu0 0.0
    %246 = vmatprep.subr.mxu0 0.0
    %247 = vmatpush1.msra.mxu0 0.0
    %248 = vmatprep.subr.mxu0 0.0
    %249 = vmatpush1.msra.mxu0 0.0
    %250 = vmatprep.subr.mxu0 0.0
    %251 = vmatpush1.msra.mxu0 0.0
    %252 = vmatprep.subr.mxu0 0.0
    %253 = vmatpush1.msra.mxu0 0.0
    %254 = vmatprep.subr.mxu0 0.0
    %255 = vmatpush1.msra.mxu0 0.0
    %256 = vmatprep.subr.mxu0 0.0
    %257 = vmatpush1.msra.mxu0 0.0
    %258 = vmatprep.subr.mxu0 0.0
    %259 = vmatpush1.msra.mxu0 0.0
    %260 = vmatprep.subr.mxu0 0.0
    %261 = vmatpush1.msra.mxu0 0.0
    %262 = vmatprep.subr.mxu0 0.0
    %263 = vmatpush1.msra.mxu0 0.0
    %264 = vmatprep.subr.mxu0 0.0
    %265 = vmatpush1.msra.mxu0 0.0
    %266 = vmatprep.subr.mxu0 0.0
    %267 = vmatpush1.msra.mxu0 0.0
    %268 = vmatprep.subr.mxu0 0.0
    %269 = vmatpush1.msra.mxu0 0.0
    %270 = vmatprep.subr.mxu0 0.0
    %271 = vmatpush1.msra.mxu0 0.0
    %272 = vmatprep.subr.mxu0 0.0
    %273 = vmatpush1.msra.mxu0 0.0
    %274 = vmatprep.subr.mxu0 0.0
    %275 = vmatpush1.msra.mxu0 0.0
    %276 = vmatprep.mubr.f32.mxu0 0.0
    %v277 = vand.u32 %v46, 4294901760
    %278 = vmatmul.mubr.f32.gmra.mrb[0].mxu0 %v277
    %v279 = vpop.f32.mrb[0].mxu0
    %v280 = vadd.f32 %v139, %v279
    %v281 = vpop.f32.mrb[0].mxu0
    %282 = vmatprep.mubr.f32.mxu0 0.0
    %v283 = vand.u32 %v49, 4294901760
    %284 = vmatmul.mubr.f32.gmra.mrb[0].mxu0 %v283
    %v285 = vpop.f32.mrb[0].mxu0
    %v286 = vadd.f32 %v149, %v285
    %v287 = vpop.f32.mrb[0].mxu0
    %288 = vmatprep.mubr.f32.mxu0 0.0
    %v289 = vand.u32 %v52, 4294901760
    %290 = vmatmul.mubr.f32.gmra.mrb[0].mxu0 %v289
    %v291 = vpop.f32.mrb[0].mxu0
    %v292 = vadd.f32 %v159, %v291
    %v293 = vpop.f32.mrb[0].mxu0
    %294 = vmatprep.mubr.f32.mxu0 0.0
    %v295 = vand.u32 %v55, 4294901760
    %296 = vmatmul.mubr.f32.gmra.mrb[0].mxu0 %v295
    %v297 = vpop.f32.mrb[0].mxu0
    %v298 = vadd.f32 %v169, %v297
    %v299 = vpop.f32.mrb[0].mxu0
    %300 = vmatprep.mubr.f32.mxu0 0.0
    %v301 = vand.u32 %v58, 4294901760
    %302 = vmatmul.mubr.f32.gmra.mrb[0].mxu0 %v301
    %v303 = vpop.f32.mrb[0].mxu0
    %v304 = vadd.f32 %v179, %v303
    %v305 = vpop.f32.mrb[0].mxu0
    %306 = vmatprep.mubr.f32.mxu0 0.0
    %v307 = vand.u32 %v61, 4294901760
    %308 = vmatmul.mubr.f32.gmra.mrb[0].mxu0 %v307
    %v309 = vpop.f32.mrb[0].mxu0
    %v310 = vadd.f32 %v189, %v309
    %v311 = vpop.f32.mrb[0].mxu0
    %312 = vdwg.mxu0
    %313 = vmatprep.subr.mxu0 0.0
    %v314 = vand.u32 %v33, 4294901760
    %v315 = vsub.f32 %v33, %v314
    %316 = vmatpush1.msra.mxu0 %v315
    %317 = vmatprep.subr.mxu0 0.0
    %v318 = vand.u32 %v34, 4294901760
    %v319 = vsub.f32 %v34, %v318
    %320 = vmatpush1.msra.mxu0 %v319
    %321 = vmatprep.subr.mxu0 0.0
    %v322 = vand.u32 %v35, 4294901760
    %v323 = vsub.f32 %v35, %v322
    %324 = vmatpush1.msra.mxu0 %v323
    %325 = vmatprep.subr.mxu0 0.0
    %v326 = vand.u32 %v36, 4294901760
    %v327 = vsub.f32 %v36, %v326
    %328 = vmatpush1.msra.mxu0 %v327
    %329 = vmatprep.subr.mxu0 0.0
    %330 = vmatpush1.msra.mxu0 0.0
    %331 = vmatprep.subr.mxu0 0.0
    %332 = vmatpush1.msra.mxu0 0.0
    %333 = vmatprep.subr.mxu0 0.0
    %334 = vmatpush1.msra.mxu0 0.0
    %335 = vmatprep.subr.mxu0 0.0
    %336 = vmatpush1.msra.mxu0 0.0
    %337 = vmatprep.subr.mxu0 0.0
    %338 = vmatpush1.msra.mxu0 0.0
    %339 = vmatprep.subr.mxu0 0.0
    %340 = vmatpush1.msra.mxu0 0.0
    %341 = vmatprep.subr.mxu0 0.0
    %342 = vmatpush1.msra.mxu0 0.0
    %343 = vmatprep.subr.mxu0 0.0
    %344 = vmatpush1.msra.mxu0 0.0
    %345 = vmatprep.subr.mxu0 0.0
    %346 = vmatpush1.msra.mxu0 0.0
    %347 = vmatprep.subr.mxu0 0.0
    %348 = vmatpush1.msra.mxu0 0.0
    %349 = vmatprep.subr.mxu0 0.0
    %350 = vmatpush1.msra.mxu0 0.0
    %351 = vmatprep.subr.mxu0 0.0
    %352 = vmatpush1.msra.mxu0 0.0
    %353 = vmatprep.subr.mxu0 0.0
    %354 = vmatpush1.msra.mxu0 0.0
    %355 = vmatprep.subr.mxu0 0.0
    %356 = vmatpush1.msra.mxu0 0.0
    %357 = vmatprep.subr.mxu0 0.0
    %358 = vmatpush1.msra.mxu0 0.0
    %359 = vmatprep.subr.mxu0 0.0
    %360 = vmatpush1.msra.mxu0 0.0
    %361 = vmatprep.subr.mxu0 0.0
    %362 = vmatpush1.msra.mxu0 0.0
    %363 = vmatprep.subr.mxu0 0.0
    %364 = vmatpush1.msra.mxu0 0.0
    %365 = vmatprep.subr.mxu0 0.0
    %366 = vmatpush1.msra.mxu0 0.0
    %367 = vmatprep.subr.mxu0 0.0
    %368 = vmatpush1.msra.mxu0 0.0
    %369 = vmatprep.subr.mxu0 0.0
    %370 = vmatpush1.msra.mxu0 0.0
    %371 = vmatprep.subr.mxu0 0.0
    %372 = vmatpush1.msra.mxu0 0.0
    %373 = vmatprep.subr.mxu0 0.0
    %374 = vmatpush1.msra.mxu0 0.0
    %375 = vmatprep.subr.mxu0 0.0
    %376 = vmatpush1.msra.mxu0 0.0
    %377 = vmatprep.subr.mxu0 0.0
    %378 = vmatpush1.msra.mxu0 0.0
    %379 = vmatprep.subr.mxu0 0.0
    %380 = vmatpush1.msra.mxu0 0.0
    %381 = vmatprep.subr.mxu0 0.0
    %382 = vmatpush1.msra.mxu0 0.0
    %383 = vmatprep.subr.mxu0 0.0
    %384 = vmatpush1.msra.mxu0 0.0
    %385 = vmatprep.mubr.f32.mxu0 0.0
    %v386 = vand.u32 %v46, 4294901760
    %v387 = vsub.f32 %v46, %v386
    %388 = vmatmul.mubr.f32.gmra.mrb[0].mxu0 %v387
    %v389 = vpop.f32.mrb[0].mxu0
    %v390 = vadd.f32 %v280, %v389
    %v391 = vpop.f32.mrb[0].mxu0
    %392 = vmatprep.mubr.f32.mxu0 0.0
    %v393 = vand.u32 %v49, 4294901760
    %v394 = vsub.f32 %v49, %v393
    %395 = vmatmul.mubr.f32.gmra.mrb[0].mxu0 %v394
    %v396 = vpop.f32.mrb[0].mxu0
    %v397 = vadd.f32 %v286, %v396
    %v398 = vpop.f32.mrb[0].mxu0
    %399 = vmatprep.mubr.f32.mxu0 0.0
    %v400 = vand.u32 %v52, 4294901760
    %v401 = vsub.f32 %v52, %v400
    %402 = vmatmul.mubr.f32.gmra.mrb[0].mxu0 %v401
    %v403 = vpop.f32.mrb[0].mxu0
    %v404 = vadd.f32 %v292, %v403
    %v405 = vpop.f32.mrb[0].mxu0
    %406 = vmatprep.mubr.f32.mxu0 0.0
    %v407 = vand.u32 %v55, 4294901760
    %v408 = vsub.f32 %v55, %v407
    %409 = vmatmul.mubr.f32.gmra.mrb[0].mxu0 %v408
    %v410 = vpop.f32.mrb[0].mxu0
    %v411 = vadd.f32 %v298, %v410
    %v412 = vpop.f32.mrb[0].mxu0
    %413 = vmatprep.mubr.f32.mxu0 0.0
    %v414 = vand.u32 %v58, 4294901760
    %v415 = vsub.f32 %v58, %v414
    %416 = vmatmul.mubr.f32.gmra.mrb[0].mxu0 %v415
    %v417 = vpop.f32.mrb[0].mxu0
    %v418 = vadd.f32 %v304, %v417
    %v419 = vpop.f32.mrb[0].mxu0
    %420 = vmatprep.mubr.f32.mxu0 0.0
    %v421 = vand.u32 %v61, 4294901760
    %v422 = vsub.f32 %v61, %v421
    %423 = vmatmul.mubr.f32.gmra.mrb[0].mxu0 %v422
    %v424 = vpop.f32.mrb[0].mxu0
    %v425 = vadd.f32 %v310, %v424
    %v426 = vpop.f32.mrb[0].mxu0
    %427 = vdwg.mxu0
    %428 = vmatprep.subr.mxu0 0.0
    %v429 = vand.u32 %v33, 4294901760
    %430 = vmatpush1.msra.mxu0 %v429
    %431 = vmatprep.subr.mxu0 0.0
    %v432 = vand.u32 %v34, 4294901760
    %433 = vmatpush1.msra.mxu0 %v432
    %434 = vmatprep.subr.mxu0 0.0
    %v435 = vand.u32 %v35, 4294901760
    %436 = vmatpush1.msra.mxu0 %v435
    %437 = vmatprep.subr.mxu0 0.0
    %v438 = vand.u32 %v36, 4294901760
    %439 = vmatpush1.msra.mxu0 %v438
    %440 = vmatprep.subr.mxu0 0.0
    %441 = vmatpush1.msra.mxu0 0.0
    %442 = vmatprep.subr.mxu0 0.0
    %443 = vmatpush1.msra.mxu0 0.0
    %444 = vmatprep.subr.mxu0 0.0
    %445 = vmatpush1.msra.mxu0 0.0
    %446 = vmatprep.subr.mxu0 0.0
    %447 = vmatpush1.msra.mxu0 0.0
    %448 = vmatprep.subr.mxu0 0.0
    %449 = vmatpush1.msra.mxu0 0.0
    %450 = vmatprep.subr.mxu0 0.0
    %451 = vmatpush1.msra.mxu0 0.0
    %452 = vmatprep.subr.mxu0 0.0
    %453 = vmatpush1.msra.mxu0 0.0
    %454 = vmatprep.subr.mxu0 0.0
    %455 = vmatpush1.msra.mxu0 0.0
    %456 = vmatprep.subr.mxu0 0.0
    %457 = vmatpush1.msra.mxu0 0.0
    %458 = vmatprep.subr.mxu0 0.0
    %459 = vmatpush1.msra.mxu0 0.0
    %460 = vmatprep.subr.mxu0 0.0
    %461 = vmatpush1.msra.mxu0 0.0
    %462 = vmatprep.subr.mxu0 0.0
    %463 = vmatpush1.msra.mxu0 0.0
    %464 = vmatprep.subr.mxu0 0.0
    %465 = vmatpush1.msra.mxu0 0.0
    %466 = vmatprep.subr.mxu0 0.0
    %467 = vmatpush1.msra.mxu0 0.0
    %468 = vmatprep.subr.mxu0 0.0
    %469 = vmatpush1.msra.mxu0 0.0
    %470 = vmatprep.subr.mxu0 0.0
    %471 = vmatpush1.msra.mxu0 0.0
    %472 = vmatprep.subr.mxu0 0.0
    %473 = vmatpush1.msra.mxu0 0.0
    %474 = vmatprep.subr.mxu0 0.0
    %475 = vmatpush1.msra.mxu0 0.0
    %476 = vmatprep.subr.mxu0 0.0
    %477 = vmatpush1.msra.mxu0 0.0
    %478 = vmatprep.subr.mxu0 0.0
    %479 = vmatpush1.msra.mxu0 0.0
    %480 = vmatprep.subr.mxu0 0.0
    %481 = vmatpush1.msra.mxu0 0.0
    %482 = vmatprep.subr.mxu0 0.0
    %483 = vmatpush1.msra.mxu0 0.0
    %484 = vmatprep.subr.mxu0 0.0
    %485 = vmatpush1.msra.mxu0 0.0
    %486 = vmatprep.subr.mxu0 0.0
    %487 = vmatpush1.msra.mxu0 0.0
    %488 = vmatprep.subr.mxu0 0.0
    %489 = vmatpush1.msra.mxu0 0.0
    %490 = vmatprep.subr.mxu0 0.0
    %491 = vmatpush1.msra.mxu0 0.0
    %492 = vmatprep.subr.mxu0 0.0
    %493 = vmatpush1.msra.mxu0 0.0
    %494 = vmatprep.subr.mxu0 0.0
    %495 = vmatpush1.msra.mxu0 0.0
    %496 = vmatprep.mubr.f32.mxu0 0.0
    %v497 = vand.u32 %v46, 4294901760
    %v498 = vsub.f32 %v46, %v497
    %v499 = vand.u32 %v498, 4294901760
    %500 = vmatmul.mubr.f32.gmra.mrb[0].mxu0 %v499
    %v501 = vpop.f32.mrb[0].mxu0
    %v502 = vadd.f32 %v390, %v501
    %v503 = vpop.f32.mrb[0].mxu0
    %504 = vmatprep.mubr.f32.mxu0 0.0
    %v505 = vand.u32 %v49, 4294901760
    %v506 = vsub.f32 %v49, %v505
    %v507 = vand.u32 %v506, 4294901760
    %508 = vmatmul.mubr.f32.gmra.mrb[0].mxu0 %v507
    %v509 = vpop.f32.mrb[0].mxu0
    %v510 = vadd.f32 %v397, %v509
    %v511 = vpop.f32.mrb[0].mxu0
    %512 = vmatprep.mubr.f32.mxu0 0.0
    %v513 = vand.u32 %v52, 4294901760
    %v514 = vsub.f32 %v52, %v513
    %v515 = vand.u32 %v514, 4294901760
    %516 = vmatmul.mubr.f32.gmra.mrb[0].mxu0 %v515
    %v517 = vpop.f32.mrb[0].mxu0
    %v518 = vadd.f32 %v404, %v517
    %v519 = vpop.f32.mrb[0].mxu0
    %520 = vmatprep.mubr.f32.mxu0 0.0
    %v521 = vand.u32 %v55, 4294901760
    %v522 = vsub.f32 %v55, %v521
    %v523 = vand.u32 %v522, 4294901760
    %524 = vmatmul.mubr.f32.gmra.mrb[0].mxu0 %v523
    %v525 = vpop.f32.mrb[0].mxu0
    %v526 = vadd.f32 %v411, %v525
    %v527 = vpop.f32.mrb[0].mxu0
    %528 = vmatprep.mubr.f32.mxu0 0.0
    %v529 = vand.u32 %v58, 4294901760
    %v530 = vsub.f32 %v58, %v529
    %v531 = vand.u32 %v530, 4294901760
    %532 = vmatmul.mubr.f32.gmra.mrb[0].mxu0 %v531
    %v533 = vpop.f32.mrb[0].mxu0
    %v534 = vadd.f32 %v418, %v533
    %v535 = vpop.f32.mrb[0].mxu0
    %536 = vmatprep.mubr.f32.mxu0 0.0
    %v537 = vand.u32 %v61, 4294901760
    %v538 = vsub.f32 %v61, %v537
    %v539 = vand.u32 %v538, 4294901760
    %540 = vmatmul.mubr.f32.gmra.mrb[0].mxu0 %v539
    %v541 = vpop.f32.mrb[0].mxu0
    %v542 = vadd.f32 %v425, %v541
    %v543 = vpop.f32.mrb[0].mxu0
    %544 = vdwg.mxu0
    %545 = vmatprep.subr.mxu0 0.0
    %v546 = vand.u32 %v33, 4294901760
    %v547 = vsub.f32 %v33, %v546
    %v548 = vand.u32 %v547, 4294901760
    %549 = vmatpush1.msra.mxu0 %v548
    %550 = vmatprep.subr.mxu0 0.0
    %v551 = vand.u32 %v34, 4294901760
    %v552 = vsub.f32 %v34, %v551
    %v553 = vand.u32 %v552, 4294901760
    %554 = vmatpush1.msra.mxu0 %v553
    %555 = vmatprep.subr.mxu0 0.0
    %v556 = vand.u32 %v35, 4294901760
    %v557 = vsub.f32 %v35, %v556
    %v558 = vand.u32 %v557, 4294901760
    %559 = vmatpush1.msra.mxu0 %v558
    %560 = vmatprep.subr.mxu0 0.0
    %v561 = vand.u32 %v36, 4294901760
    %v562 = vsub.f32 %v36, %v561
    %v563 = vand.u32 %v562, 4294901760
    %564 = vmatpush1.msra.mxu0 %v563
    %565 = vmatprep.subr.mxu0 0.0
    %566 = vmatpush1.msra.mxu0 0.0
    %567 = vmatprep.subr.mxu0 0.0
    %568 = vmatpush1.msra.mxu0 0.0
    %569 = vmatprep.subr.mxu0 0.0
    %570 = vmatpush1.msra.mxu0 0.0
    %571 = vmatprep.subr.mxu0 0.0
    %572 = vmatpush1.msra.mxu0 0.0
    %573 = vmatprep.subr.mxu0 0.0
    %574 = vmatpush1.msra.mxu0 0.0
    %575 = vmatprep.subr.mxu0 0.0
    %576 = vmatpush1.msra.mxu0 0.0
    %577 = vmatprep.subr.mxu0 0.0
    %578 = vmatpush1.msra.mxu0 0.0
    %579 = vmatprep.subr.mxu0 0.0
    %580 = vmatpush1.msra.mxu0 0.0
    %581 = vmatprep.subr.mxu0 0.0
    %582 = vmatpush1.msra.mxu0 0.0
    %583 = vmatprep.subr.mxu0 0.0
    %584 = vmatpush1.msra.mxu0 0.0
    %585 = vmatprep.subr.mxu0 0.0
    %586 = vmatpush1.msra.mxu0 0.0
    %587 = vmatprep.subr.mxu0 0.0
    %588 = vmatpush1.msra.mxu0 0.0
    %589 = vmatprep.subr.mxu0 0.0
    %590 = vmatpush1.msra.mxu0 0.0
    %591 = vmatprep.subr.mxu0 0.0
    %592 = vmatpush1.msra.mxu0 0.0
    %593 = vmatprep.subr.mxu0 0.0
    %594 = vmatpush1.msra.mxu0 0.0
    %595 = vmatprep.subr.mxu0 0.0
    %596 = vmatpush1.msra.mxu0 0.0
    %597 = vmatprep.subr.mxu0 0.0
    %598 = vmatpush1.msra.mxu0 0.0
    %599 = vmatprep.subr.mxu0 0.0
    %600 = vmatpush1.msra.mxu0 0.0
    %601 = vmatprep.subr.mxu0 0.0
    %602 = vmatpush1.msra.mxu0 0.0
    %603 = vmatprep.subr.mxu0 0.0
    %604 = vmatpush1.msra.mxu0 0.0
    %605 = vmatprep.subr.mxu0 0.0
    %606 = vmatpush1.msra.mxu0 0.0
    %607 = vmatprep.subr.mxu0 0.0
    %608 = vmatpush1.msra.mxu0 0.0
    %609 = vmatprep.subr.mxu0 0.0
    %610 = vmatpush1.msra.mxu0 0.0
    %611 = vmatprep.subr.mxu0 0.0
    %612 = vmatpush1.msra.mxu0 0.0
    %613 = vmatprep.subr.mxu0 0.0
    %614 = vmatpush1.msra.mxu0 0.0
    %615 = vmatprep.subr.mxu0 0.0
    %616 = vmatpush1.msra.mxu0 0.0
    %617 = vmatprep.subr.mxu0 0.0
    %618 = vmatpush1.msra.mxu0 0.0
    %619 = vmatprep.subr.mxu0 0.0
    %620 = vmatpush1.msra.mxu0 0.0
    %621 = vmatprep.mubr.f32.mxu0 0.0
    %v622 = vand.u32 %v46, 4294901760
    %623 = vmatmul.mubr.f32.gmra.mrb[0].mxu0 %v622
    %v624 = vpop.f32.mrb[0].mxu0
    %v625 = vadd.f32 %v502, %v624
    %v626 = vpop.f32.mrb[0].mxu0
    %627 = vmatprep.mubr.f32.mxu0 0.0
    %v628 = vand.u32 %v49, 4294901760
    %629 = vmatmul.mubr.f32.gmra.mrb[0].mxu0 %v628
    %v630 = vpop.f32.mrb[0].mxu0
    %v631 = vadd.f32 %v510, %v630
    %v632 = vpop.f32.mrb[0].mxu0
    %633 = vmatprep.mubr.f32.mxu0 0.0
    %v634 = vand.u32 %v52, 4294901760
    %635 = vmatmul.mubr.f32.gmra.mrb[0].mxu0 %v634
    %v636 = vpop.f32.mrb[0].mxu0
    %v637 = vadd.f32 %v518, %v636
    %v638 = vpop.f32.mrb[0].mxu0
    %639 = vmatprep.mubr.f32.mxu0 0.0
    %v640 = vand.u32 %v55, 4294901760
    %641 = vmatmul.mubr.f32.gmra.mrb[0].mxu0 %v640
    %v642 = vpop.f32.mrb[0].mxu0
    %v643 = vadd.f32 %v526, %v642
    %v644 = vpop.f32.mrb[0].mxu0
    %645 = vmatprep.mubr.f32.mxu0 0.0
    %v646 = vand.u32 %v58, 4294901760
    %647 = vmatmul.mubr.f32.gmra.mrb[0].mxu0 %v646
    %v648 = vpop.f32.mrb[0].mxu0
    %v649 = vadd.f32 %v534, %v648
    %v650 = vpop.f32.mrb[0].mxu0
    %651 = vmatprep.mubr.f32.mxu0 0.0
    %v652 = vand.u32 %v61, 4294901760
    %653 = vmatmul.mubr.f32.gmra.mrb[0].mxu0 %v652
    %v654 = vpop.f32.mrb[0].mxu0
    %v655 = vadd.f32 %v542, %v654
    %v656 = vpop.f32.mrb[0].mxu0
    %657 = vdwg.mxu0
    %658 = vmatprep.subr.mxu0 0.0
    %v659 = vand.u32 %v33, 4294901760
    %660 = vmatpush1.msra.mxu0 %v659
    %661 = vmatprep.subr.mxu0 0.0
    %v662 = vand.u32 %v34, 4294901760
    %663 = vmatpush1.msra.mxu0 %v662
    %664 = vmatprep.subr.mxu0 0.0
    %v665 = vand.u32 %v35, 4294901760
    %666 = vmatpush1.msra.mxu0 %v665
    %667 = vmatprep.subr.mxu0 0.0
    %v668 = vand.u32 %v36, 4294901760
    %669 = vmatpush1.msra.mxu0 %v668
    %670 = vmatprep.subr.mxu0 0.0
    %671 = vmatpush1.msra.mxu0 0.0
    %672 = vmatprep.subr.mxu0 0.0
    %673 = vmatpush1.msra.mxu0 0.0
    %674 = vmatprep.subr.mxu0 0.0
    %675 = vmatpush1.msra.mxu0 0.0
    %676 = vmatprep.subr.mxu0 0.0
    %677 = vmatpush1.msra.mxu0 0.0
    %678 = vmatprep.subr.mxu0 0.0
    %679 = vmatpush1.msra.mxu0 0.0
    %680 = vmatprep.subr.mxu0 0.0
    %681 = vmatpush1.msra.mxu0 0.0
    %682 = vmatprep.subr.mxu0 0.0
    %683 = vmatpush1.msra.mxu0 0.0
    %684 = vmatprep.subr.mxu0 0.0
    %685 = vmatpush1.msra.mxu0 0.0
    %686 = vmatprep.subr.mxu0 0.0
    %687 = vmatpush1.msra.mxu0 0.0
    %688 = vmatprep.subr.mxu0 0.0
    %689 = vmatpush1.msra.mxu0 0.0
    %690 = vmatprep.subr.mxu0 0.0
    %691 = vmatpush1.msra.mxu0 0.0
    %692 = vmatprep.subr.mxu0 0.0
    %693 = vmatpush1.msra.mxu0 0.0
    %694 = vmatprep.subr.mxu0 0.0
    %695 = vmatpush1.msra.mxu0 0.0
    %696 = vmatprep.subr.mxu0 0.0
    %697 = vmatpush1.msra.mxu0 0.0
    %698 = vmatprep.subr.mxu0 0.0
    %699 = vmatpush1.msra.mxu0 0.0
    %700 = vmatprep.subr.mxu0 0.0
    %701 = vmatpush1.msra.mxu0 0.0
    %702 = vmatprep.subr.mxu0 0.0
    %703 = vmatpush1.msra.mxu0 0.0
    %704 = vmatprep.subr.mxu0 0.0
    %705 = vmatpush1.msra.mxu0 0.0
    %706 = vmatprep.subr.mxu0 0.0
    %707 = vmatpush1.msra.mxu0 0.0
    %708 = vmatprep.subr.mxu0 0.0
    %709 = vmatpush1.msra.mxu0 0.0
    %710 = vmatprep.subr.mxu0 0.0
    %711 = vmatpush1.msra.mxu0 0.0
    %712 = vmatprep.subr.mxu0 0.0
    %713 = vmatpush1.msra.mxu0 0.0
    %714 = vmatprep.subr.mxu0 0.0
    %715 = vmatpush1.msra.mxu0 0.0
    %716 = vmatprep.subr.mxu0 0.0
    %717 = vmatpush1.msra.mxu0 0.0
    %718 = vmatprep.subr.mxu0 0.0
    %719 = vmatpush1.msra.mxu0 0.0
    %720 = vmatprep.subr.mxu0 0.0
    %721 = vmatpush1.msra.mxu0 0.0
    %722 = vmatprep.subr.mxu0 0.0
    %723 = vmatpush1.msra.mxu0 0.0
    %724 = vmatprep.subr.mxu0 0.0
    %725 = vmatpush1.msra.mxu0 0.0
    %726 = vmatprep.mubr.f32.mxu0 0.0
    %v727 = vand.u32 %v46, 4294901760
    %728 = vmatmul.mubr.f32.gmra.mrb[0].mxu0 %v727
    %v729 = vpop.f32.mrb[0].mxu0
    %v730 = vadd.f32 %v625, %v729
    %v731 = vpop.f32.mrb[0].mxu0
    %732 = vmatprep.mubr.f32.mxu0 0.0
    %v733 = vand.u32 %v49, 4294901760
    %734 = vmatmul.mubr.f32.gmra.mrb[0].mxu0 %v733
    %v735 = vpop.f32.mrb[0].mxu0
    %v736 = vadd.f32 %v631, %v735
    %v737 = vpop.f32.mrb[0].mxu0
    %738 = vmatprep.mubr.f32.mxu0 0.0
    %v739 = vand.u32 %v52, 4294901760
    %740 = vmatmul.mubr.f32.gmra.mrb[0].mxu0 %v739
    %v741 = vpop.f32.mrb[0].mxu0
    %v742 = vadd.f32 %v637, %v741
    %v743 = vpop.f32.mrb[0].mxu0
    %744 = vmatprep.mubr.f32.mxu0 0.0
    %v745 = vand.u32 %v55, 4294901760
    %746 = vmatmul.mubr.f32.gmra.mrb[0].mxu0 %v745
    %v747 = vpop.f32.mrb[0].mxu0
    %v748 = vadd.f32 %v643, %v747
    %v749 = vpop.f32.mrb[0].mxu0
    %750 = vmatprep.mubr.f32.mxu0 0.0
    %v751 = vand.u32 %v58, 4294901760
    %752 = vmatmul.mubr.f32.gmra.mrb[0].mxu0 %v751
    %v753 = vpop.f32.mrb[0].mxu0
    %v754 = vadd.f32 %v649, %v753
    %v755 = vpop.f32.mrb[0].mxu0
    %756 = vmatprep.mubr.f32.mxu0 0.0
    %v757 = vand.u32 %v61, 4294901760
    %758 = vmatmul.mubr.f32.gmra.mrb[0].mxu0 %v757
    %v759 = vpop.f32.mrb[0].mxu0
    %v760 = vadd.f32 %v655, %v759
    %v761 = vpop.f32.mrb[0].mxu0
    %762 = vdwg.mxu0
    %v763 = vmax.f32 %v730, 0.0
    %v764 = vmax.f32 %v736, 0.0
    %v765 = vmax.f32 %v742, 0.0
    %v766 = vmax.f32 %v748, 0.0
    %v767 = vmax.f32 %v754, 0.0
    %v768 = vmax.f32 %v760, 0.0
    %v769 = vld [vmem:[%s3] sm:$0xff]
    %v770 = vld [vmem:[%s3 + $0x8] sm:$0xff]
    %v771 = vld [vmem:[%s3 + $0x10] sm:$0xff]
    %v772 = vld [vmem:[%s3 + $0x18] sm:$0xff]
    %v773 = vld [vmem:[%s4] sm:$0x1]
    %v775 = vlaneseq
    %v776 = vshrl.u32 %v775, 7
    %v777 = vsub.s32 0, %v776
    %v778 = vrot.slane %v773, %v777
    %v781 = vsel %vm44, %v763, 0
    %v784 = vsel %vm44, %v764, 0
    %v787 = vsel %vm44, %v765, 0
    %v790 = vsel %vm44, %v766, 0
    %v793 = vsel %vm44, %v767, 0
    %v796 = vsel %vm44, %v768, 0
    %798 = vmatprep.subr.mxu0 0.0
    %v799 = vand.u32 %v769, 4294901760
    %800 = vmatpush1.msra.mxu0 %v799
    %801 = vmatprep.subr.mxu0 0.0
    %v802 = vand.u32 %v770, 4294901760
    %803 = vmatpush1.msra.mxu0 %v802
    %804 = vmatprep.subr.mxu0 0.0
    %v805 = vand.u32 %v771, 4294901760
    %806 = vmatpush1.msra.mxu0 %v805
    %807 = vmatprep.subr.mxu0 0.0
    %v808 = vand.u32 %v772, 4294901760
    %809 = vmatpush1.msra.mxu0 %v808
    %810 = vmatprep.subr.mxu0 0.0
    %811 = vmatpush1.msra.mxu0 0.0
    %812 = vmatprep.subr.mxu0 0.0
    %813 = vmatpush1.msra.mxu0 0.0
    %814 = vmatprep.subr.mxu0 0.0
    %815 = vmatpush1.msra.mxu0 0.0
    %816 = vmatprep.subr.mxu0 0.0
    %817 = vmatpush1.msra.mxu0 0.0
    %818 = vmatprep.subr.mxu0 0.0
    %819 = vmatpush1.msra.mxu0 0.0
    %820 = vmatprep.subr.mxu0 0.0
    %821 = vmatpush1.msra.mxu0 0.0
    %822 = vmatprep.subr.mxu0 0.0
    %823 = vmatpush1.msra.mxu0 0.0
    %824 = vmatprep.subr.mxu0 0.0
    %825 = vmatpush1.msra.mxu0 0.0
    %826 = vmatprep.subr.mxu0 0.0
    %827 = vmatpush1.msra.mxu0 0.0
    %828 = vmatprep.subr.mxu0 0.0
    %829 = vmatpush1.msra.mxu0 0.0
    %830 = vmatprep.subr.mxu0 0.0
    %831 = vmatpush1.msra.mxu0 0.0
    %832 = vmatprep.subr.mxu0 0.0
    %833 = vmatpush1.msra.mxu0 0.0
    %834 = vmatprep.subr.mxu0 0.0
    %835 = vmatpush1.msra.mxu0 0.0
    %836 = vmatprep.subr.mxu0 0.0
    %837 = vmatpush1.msra.mxu0 0.0
    %838 = vmatprep.subr.mxu0 0.0
    %839 = vmatpush1.msra.mxu0 0.0
    %840 = vmatprep.subr.mxu0 0.0
    %841 = vmatpush1.msra.mxu0 0.0
    %842 = vmatprep.subr.mxu0 0.0
    %843 = vmatpush1.msra.mxu0 0.0
    %844 = vmatprep.subr.mxu0 0.0
    %845 = vmatpush1.msra.mxu0 0.0
    %846 = vmatprep.subr.mxu0 0.0
    %847 = vmatpush1.msra.mxu0 0.0
    %848 = vmatprep.subr.mxu0 0.0
    %849 = vmatpush1.msra.mxu0 0.0
    %850 = vmatprep.subr.mxu0 0.0
    %851 = vmatpush1.msra.mxu0 0.0
    %852 = vmatprep.subr.mxu0 0.0
    %853 = vmatpush1.msra.mxu0 0.0
    %854 = vmatprep.subr.mxu0 0.0
    %855 = vmatpush1.msra.mxu0 0.0
    %856 = vmatprep.subr.mxu0 0.0
    %857 = vmatpush1.msra.mxu0 0.0
    %858 = vmatprep.subr.mxu0 0.0
    %859 = vmatpush1.msra.mxu0 0.0
    %860 = vmatprep.subr.mxu0 0.0
    %861 = vmatpush1.msra.mxu0 0.0
    %862 = vmatprep.subr.mxu0 0.0
    %863 = vmatpush1.msra.mxu0 0.0
    %864 = vmatprep.subr.mxu0 0.0
    %865 = vmatpush1.msra.mxu0 0.0
    %866 = vmatprep.mubr.f32.mxu0 0.0
    %v867 = vand.u32 %v781, 4294901760
    %v868 = vsub.f32 %v781, %v867
    %v869 = vand.u32 %v868, 4294901760
    %v870 = vsub.f32 %v868, %v869
    %v871 = vand.u32 %v870, 4294901760
    %872 = vmatmul.mubr.f32.gmra.mrb[0].mxu0 %v871
    %v873 = vpop.f32.mrb[0].mxu0
    %v874 = vadd.f32 %v778, %v873
    %v875 = vpop.f32.mrb[0].mxu0
    %876 = vmatprep.mubr.f32.mxu0 0.0
    %v877 = vand.u32 %v784, 4294901760
    %v878 = vsub.f32 %v784, %v877
    %v879 = vand.u32 %v878, 4294901760
    %v880 = vsub.f32 %v878, %v879
    %v881 = vand.u32 %v880, 4294901760
    %882 = vmatmul.mubr.f32.gmra.mrb[0].mxu0 %v881
    %v883 = vpop.f32.mrb[0].mxu0
    %v884 = vadd.f32 %v778, %v883
    %v885 = vpop.f32.mrb[0].mxu0
    %886 = vmatprep.mubr.f32.mxu0 0.0
    %v887 = vand.u32 %v787, 4294901760
    %v888 = vsub.f32 %v787, %v887
    %v889 = vand.u32 %v888, 4294901760
    %v890 = vsub.f32 %v888, %v889
    %v891 = vand.u32 %v890, 4294901760
    %892 = vmatmul.mubr.f32.gmra.mrb[0].mxu0 %v891
    %v893 = vpop.f32.mrb[0].mxu0
    %v894 = vadd.f32 %v778, %v893
    %v895 = vpop.f32.mrb[0].mxu0
    %896 = vmatprep.mubr.f32.mxu0 0.0
    %v897 = vand.u32 %v790, 4294901760
    %v898 = vsub.f32 %v790, %v897
    %v899 = vand.u32 %v898, 4294901760
    %v900 = vsub.f32 %v898, %v899
    %v901 = vand.u32 %v900, 4294901760
    %902 = vmatmul.mubr.f32.gmra.mrb[0].mxu0 %v901
    %v903 = vpop.f32.mrb[0].mxu0
    %v904 = vadd.f32 %v778, %v903
    %v905 = vpop.f32.mrb[0].mxu0
    %906 = vmatprep.mubr.f32.mxu0 0.0
    %v907 = vand.u32 %v793, 4294901760
    %v908 = vsub.f32 %v793, %v907
    %v909 = vand.u32 %v908, 4294901760
    %v910 = vsub.f32 %v908, %v909
    %v911 = vand.u32 %v910, 4294901760
    %912 = vmatmul.mubr.f32.gmra.mrb[0].mxu0 %v911
    %v913 = vpop.f32.mrb[0].mxu0
    %v914 = vadd.f32 %v778, %v913
    %v915 = vpop.f32.mrb[0].mxu0
    %916 = vmatprep.mubr.f32.mxu0 0.0
    %v917 = vand.u32 %v796, 4294901760
    %v918 = vsub.f32 %v796, %v917
    %v919 = vand.u32 %v918, 4294901760
    %v920 = vsub.f32 %v918, %v919
    %v921 = vand.u32 %v920, 4294901760
    %922 = vmatmul.mubr.f32.gmra.mrb[0].mxu0 %v921
    %v923 = vpop.f32.mrb[0].mxu0
    %v924 = vadd.f32 %v778, %v923
    %v925 = vpop.f32.mrb[0].mxu0
    %926 = vdwg.mxu0
    %927 = vmatprep.subr.mxu0 0.0
    %v928 = vand.u32 %v769, 4294901760
    %v929 = vsub.f32 %v769, %v928
    %v930 = vand.u32 %v929, 4294901760
    %v931 = vsub.f32 %v929, %v930
    %v932 = vand.u32 %v931, 4294901760
    %933 = vmatpush1.msra.mxu0 %v932
    %934 = vmatprep.subr.mxu0 0.0
    %v935 = vand.u32 %v770, 4294901760
    %v936 = vsub.f32 %v770, %v935
    %v937 = vand.u32 %v936, 4294901760
    %v938 = vsub.f32 %v936, %v937
    %v939 = vand.u32 %v938, 4294901760
    %940 = vmatpush1.msra.mxu0 %v939
    %941 = vmatprep.subr.mxu0 0.0
    %v942 = vand.u32 %v771, 4294901760
    %v943 = vsub.f32 %v771, %v942
    %v944 = vand.u32 %v943, 4294901760
    %v945 = vsub.f32 %v943, %v944
    %v946 = vand.u32 %v945, 4294901760
    %947 = vmatpush1.msra.mxu0 %v946
    %948 = vmatprep.subr.mxu0 0.0
    %v949 = vand.u32 %v772, 4294901760
    %v950 = vsub.f32 %v772, %v949
    %v951 = vand.u32 %v950, 4294901760
    %v952 = vsub.f32 %v950, %v951
    %v953 = vand.u32 %v952, 4294901760
    %954 = vmatpush1.msra.mxu0 %v953
    %955 = vmatprep.subr.mxu0 0.0
    %956 = vmatpush1.msra.mxu0 0.0
    %957 = vmatprep.subr.mxu0 0.0
    %958 = vmatpush1.msra.mxu0 0.0
    %959 = vmatprep.subr.mxu0 0.0
    %960 = vmatpush1.msra.mxu0 0.0
    %961 = vmatprep.subr.mxu0 0.0
    %962 = vmatpush1.msra.mxu0 0.0
    %963 = vmatprep.subr.mxu0 0.0
    %964 = vmatpush1.msra.mxu0 0.0
    %965 = vmatprep.subr.mxu0 0.0
    %966 = vmatpush1.msra.mxu0 0.0
    %967 = vmatprep.subr.mxu0 0.0
    %968 = vmatpush1.msra.mxu0 0.0
    %969 = vmatprep.subr.mxu0 0.0
    %970 = vmatpush1.msra.mxu0 0.0
    %971 = vmatprep.subr.mxu0 0.0
    %972 = vmatpush1.msra.mxu0 0.0
    %973 = vmatprep.subr.mxu0 0.0
    %974 = vmatpush1.msra.mxu0 0.0
    %975 = vmatprep.subr.mxu0 0.0
    %976 = vmatpush1.msra.mxu0 0.0
    %977 = vmatprep.subr.mxu0 0.0
    %978 = vmatpush1.msra.mxu0 0.0
    %979 = vmatprep.subr.mxu0 0.0
    %980 = vmatpush1.msra.mxu0 0.0
    %981 = vmatprep.subr.mxu0 0.0
    %982 = vmatpush1.msra.mxu0 0.0
    %983 = vmatprep.subr.mxu0 0.0
    %984 = vmatpush1.msra.mxu0 0.0
    %985 = vmatprep.subr.mxu0 0.0
    %986 = vmatpush1.msra.mxu0 0.0
    %987 = vmatprep.subr.mxu0 0.0
    %988 = vmatpush1.msra.mxu0 0.0
    %989 = vmatprep.subr.mxu0 0.0
    %990 = vmatpush1.msra.mxu0 0.0
    %991 = vmatprep.subr.mxu0 0.0
    %992 = vmatpush1.msra.mxu0 0.0
    %993 = vmatprep.subr.mxu0 0.0
    %994 = vmatpush1.msra.mxu0 0.0
    %995 = vmatprep.subr.mxu0 0.0
    %996 = vmatpush1.msra.mxu0 0.0
    %997 = vmatprep.subr.mxu0 0.0
    %998 = vmatpush1.msra.mxu0 0.0
    %999 = vmatprep.subr.mxu0 0.0
    %1000 = vmatpush1.msra.mxu0 0.0
    %1001 = vmatprep.subr.mxu0 0.0
    %1002 = vmatpush1.msra.mxu0 0.0
    %1003 = vmatprep.subr.mxu0 0.0
    %1004 = vmatpush1.msra.mxu0 0.0
    %1005 = vmatprep.subr.mxu0 0.0
    %1006 = vmatpush1.msra.mxu0 0.0
    %1007 = vmatprep.subr.mxu0 0.0
    %1008 = vmatpush1.msra.mxu0 0.0
    %1009 = vmatprep.subr.mxu0 0.0
    %1010 = vmatpush1.msra.mxu0 0.0
    %1011 = vmatprep.mubr.f32.mxu0 0.0
    %v1012 = vand.u32 %v781, 4294901760
    %1013 = vmatmul.mubr.f32.gmra.mrb[0].mxu0 %v1012
    %v1014 = vpop.f32.mrb[0].mxu0
    %v1015 = vadd.f32 %v874, %v1014
    %v1016 = vpop.f32.mrb[0].mxu0
    %1017 = vmatprep.mubr.f32.mxu0 0.0
    %v1018 = vand.u32 %v784, 4294901760
    %1019 = vmatmul.mubr.f32.gmra.mrb[0].mxu0 %v1018
    %v1020 = vpop.f32.mrb[0].mxu0
    %v1021 = vadd.f32 %v884, %v1020
    %v1022 = vpop.f32.mrb[0].mxu0
    %1023 = vmatprep.mubr.f32.mxu0 0.0
    %v1024 = vand.u32 %v787, 4294901760
    %1025 = vmatmul.mubr.f32.gmra.mrb[0].mxu0 %v1024
    %v1026 = vpop.f32.mrb[0].mxu0
    %v1027 = vadd.f32 %v894, %v1026
    %v1028 = vpop.f32.mrb[0].mxu0
    %1029 = vmatprep.mubr.f32.mxu0 0.0
    %v1030 = vand.u32 %v790, 4294901760
    %1031 = vmatmul.mubr.f32.gmra.mrb[0].mxu0 %v1030
    %v1032 = vpop.f32.mrb[0].mxu0
    %v1033 = vadd.f32 %v904, %v1032
    %v1034 = vpop.f32.mrb[0].mxu0
    %1035 = vmatprep.mubr.f32.mxu0 0.0
    %v1036 = vand.u32 %v793, 4294901760
    %1037 = vmatmul.mubr.f32.gmra.mrb[0].mxu0 %v1036
    %v1038 = vpop.f32.mrb[0].mxu0
    %v1039 = vadd.f32 %v914, %v1038
    %v1040 = vpop.f32.mrb[0].mxu0
    %1041 = vmatprep.mubr.f32.mxu0 0.0
    %v1042 = vand.u32 %v796, 4294901760
    %1043 = vmatmul.mubr.f32.gmra.mrb[0].mxu0 %v1042
    %v1044 = vpop.f32.mrb[0].mxu0
    %v1045 = vadd.f32 %v924, %v1044
    %v1046 = vpop.f32.mrb[0].mxu0
    %1047 = vdwg.mxu0
    %1048 = vmatprep.subr.mxu0 0.0
    %v1049 = vand.u32 %v769, 4294901760
    %v1050 = vsub.f32 %v769, %v1049
    %1051 = vmatpush1.msra.mxu0 %v1050
    %1052 = vmatprep.subr.mxu0 0.0
    %v1053 = vand.u32 %v770, 4294901760
    %v1054 = vsub.f32 %v770, %v1053
    %1055 = vmatpush1.msra.mxu0 %v1054
    %1056 = vmatprep.subr.mxu0 0.0
    %v1057 = vand.u32 %v771, 4294901760
    %v1058 = vsub.f32 %v771, %v1057
    %1059 = vmatpush1.msra.mxu0 %v1058
    %1060 = vmatprep.subr.mxu0 0.0
    %v1061 = vand.u32 %v772, 4294901760
    %v1062 = vsub.f32 %v772, %v1061
    %1063 = vmatpush1.msra.mxu0 %v1062
    %1064 = vmatprep.subr.mxu0 0.0
    %1065 = vmatpush1.msra.mxu0 0.0
    %1066 = vmatprep.subr.mxu0 0.0
    %1067 = vmatpush1.msra.mxu0 0.0
    %1068 = vmatprep.subr.mxu0 0.0
    %1069 = vmatpush1.msra.mxu0 0.0
    %1070 = vmatprep.subr.mxu0 0.0
    %1071 = vmatpush1.msra.mxu0 0.0
    %1072 = vmatprep.subr.mxu0 0.0
    %1073 = vmatpush1.msra.mxu0 0.0
    %1074 = vmatprep.subr.mxu0 0.0
    %1075 = vmatpush1.msra.mxu0 0.0
    %1076 = vmatprep.subr.mxu0 0.0
    %1077 = vmatpush1.msra.mxu0 0.0
    %1078 = vmatprep.subr.mxu0 0.0
    %1079 = vmatpush1.msra.mxu0 0.0
    %1080 = vmatprep.subr.mxu0 0.0
    %1081 = vmatpush1.msra.mxu0 0.0
    %1082 = vmatprep.subr.mxu0 0.0
    %1083 = vmatpush1.msra.mxu0 0.0
    %1084 = vmatprep.subr.mxu0 0.0
    %1085 = vmatpush1.msra.mxu0 0.0
    %1086 = vmatprep.subr.mxu0 0.0
    %1087 = vmatpush1.msra.mxu0 0.0
    %1088 = vmatprep.subr.mxu0 0.0
    %1089 = vmatpush1.msra.mxu0 0.0
    %1090 = vmatprep.subr.mxu0 0.0
    %1091 = vmatpush1.msra.mxu0 0.0
    %1092 = vmatprep.subr.mxu0 0.0
    %1093 = vmatpush1.msra.mxu0 0.0
    %1094 = vmatprep.subr.mxu0 0.0
    %1095 = vmatpush1.msra.mxu0 0.0
    %1096 = vmatprep.subr.mxu0 0.0
    %1097 = vmatpush1.msra.mxu0 0.0
    %1098 = vmatprep.subr.mxu0 0.0
    %1099 = vmatpush1.msra.mxu0 0.0
    %1100 = vmatprep.subr.mxu0 0.0
    %1101 = vmatpush1.msra.mxu0 0.0
    %1102 = vmatprep.subr.mxu0 0.0
    %1103 = vmatpush1.msra.mxu0 0.0
    %1104 = vmatprep.subr.mxu0 0.0
    %1105 = vmatpush1.msra.mxu0 0.0
    %1106 = vmatprep.subr.mxu0 0.0
    %1107 = vmatpush1.msra.mxu0 0.0
    %1108 = vmatprep.subr.mxu0 0.0
    %1109 = vmatpush1.msra.mxu0 0.0
    %1110 = vmatprep.subr.mxu0 0.0
    %1111 = vmatpush1.msra.mxu0 0.0
    %1112 = vmatprep.subr.mxu0 0.0
    %1113 = vmatpush1.msra.mxu0 0.0
    %1114 = vmatprep.subr.mxu0 0.0
    %1115 = vmatpush1.msra.mxu0 0.0
    %1116 = vmatprep.subr.mxu0 0.0
    %1117 = vmatpush1.msra.mxu0 0.0
    %1118 = vmatprep.subr.mxu0 0.0
    %1119 = vmatpush1.msra.mxu0 0.0
    %1120 = vmatprep.mubr.f32.mxu0 0.0
    %v1121 = vand.u32 %v781, 4294901760
    %v1122 = vsub.f32 %v781, %v1121
    %1123 = vmatmul.mubr.f32.gmra.mrb[0].mxu0 %v1122
    %v1124 = vpop.f32.mrb[0].mxu0
    %v1125 = vadd.f32 %v1015, %v1124
    %v1126 = vpop.f32.mrb[0].mxu0
    %1127 = vmatprep.mubr.f32.mxu0 0.0
    %v1128 = vand.u32 %v784, 4294901760
    %v1129 = vsub.f32 %v784, %v1128
    %1130 = vmatmul.mubr.f32.gmra.mrb[0].mxu0 %v1129
    %v1131 = vpop.f32.mrb[0].mxu0
    %v1132 = vadd.f32 %v1021, %v1131
    %v1133 = vpop.f32.mrb[0].mxu0
    %1134 = vmatprep.mubr.f32.mxu0 0.0
    %v1135 = vand.u32 %v787, 4294901760
    %v1136 = vsub.f32 %v787, %v1135
    %1137 = vmatmul.mubr.f32.gmra.mrb[0].mxu0 %v1136
    %v1138 = vpop.f32.mrb[0].mxu0
    %v1139 = vadd.f32 %v1027, %v1138
    %v1140 = vpop.f32.mrb[0].mxu0
    %1141 = vmatprep.mubr.f32.mxu0 0.0
    %v1142 = vand.u32 %v790, 4294901760
    %v1143 = vsub.f32 %v790, %v1142
    %1144 = vmatmul.mubr.f32.gmra.mrb[0].mxu0 %v1143
    %v1145 = vpop.f32.mrb[0].mxu0
    %v1146 = vadd.f32 %v1033, %v1145
    %v1147 = vpop.f32.mrb[0].mxu0
    %1148 = vmatprep.mubr.f32.mxu0 0.0
    %v1149 = vand.u32 %v793, 4294901760
    %v1150 = vsub.f32 %v793, %v1149
    %1151 = vmatmul.mubr.f32.gmra.mrb[0].mxu0 %v1150
    %v1152 = vpop.f32.mrb[0].mxu0
    %v1153 = vadd.f32 %v1039, %v1152
    %v1154 = vpop.f32.mrb[0].mxu0
    %1155 = vmatprep.mubr.f32.mxu0 0.0
    %v1156 = vand.u32 %v796, 4294901760
    %v1157 = vsub.f32 %v796, %v1156
    %1158 = vmatmul.mubr.f32.gmra.mrb[0].mxu0 %v1157
    %v1159 = vpop.f32.mrb[0].mxu0
    %v1160 = vadd.f32 %v1045, %v1159
    %v1161 = vpop.f32.mrb[0].mxu0
    %1162 = vdwg.mxu0
    %1163 = vmatprep.subr.mxu0 0.0
    %v1164 = vand.u32 %v769, 4294901760
    %1165 = vmatpush1.msra.mxu0 %v1164
    %1166 = vmatprep.subr.mxu0 0.0
    %v1167 = vand.u32 %v770, 4294901760
    %1168 = vmatpush1.msra.mxu0 %v1167
    %1169 = vmatprep.subr.mxu0 0.0
    %v1170 = vand.u32 %v771, 4294901760
    %1171 = vmatpush1.msra.mxu0 %v1170
    %1172 = vmatprep.subr.mxu0 0.0
    %v1173 = vand.u32 %v772, 4294901760
    %1174 = vmatpush1.msra.mxu0 %v1173
    %1175 = vmatprep.subr.mxu0 0.0
    %1176 = vmatpush1.msra.mxu0 0.0
    %1177 = vmatprep.subr.mxu0 0.0
    %1178 = vmatpush1.msra.mxu0 0.0
    %1179 = vmatprep.subr.mxu0 0.0
    %1180 = vmatpush1.msra.mxu0 0.0
    %1181 = vmatprep.subr.mxu0 0.0
    %1182 = vmatpush1.msra.mxu0 0.0
    %1183 = vmatprep.subr.mxu0 0.0
    %1184 = vmatpush1.msra.mxu0 0.0
    %1185 = vmatprep.subr.mxu0 0.0
    %1186 = vmatpush1.msra.mxu0 0.0
    %1187 = vmatprep.subr.mxu0 0.0
    %1188 = vmatpush1.msra.mxu0 0.0
    %1189 = vmatprep.subr.mxu0 0.0
    %1190 = vmatpush1.msra.mxu0 0.0
    %1191 = vmatprep.subr.mxu0 0.0
    %1192 = vmatpush1.msra.mxu0 0.0
    %1193 = vmatprep.subr.mxu0 0.0
    %1194 = vmatpush1.msra.mxu0 0.0
    %1195 = vmatprep.subr.mxu0 0.0
    %1196 = vmatpush1.msra.mxu0 0.0
    %1197 = vmatprep.subr.mxu0 0.0
    %1198 = vmatpush1.msra.mxu0 0.0
    %1199 = vmatprep.subr.mxu0 0.0
    %1200 = vmatpush1.msra.mxu0 0.0
    %1201 = vmatprep.subr.mxu0 0.0
    %1202 = vmatpush1.msra.mxu0 0.0
    %1203 = vmatprep.subr.mxu0 0.0
    %1204 = vmatpush1.msra.mxu0 0.0
    %1205 = vmatprep.subr.mxu0 0.0
    %1206 = vmatpush1.msra.mxu0 0.0
    %1207 = vmatprep.subr.mxu0 0.0
    %1208 = vmatpush1.msra.mxu0 0.0
    %1209 = vmatprep.subr.mxu0 0.0
    %1210 = vmatpush1.msra.mxu0 0.0
    %1211 = vmatprep.subr.mxu0 0.0
    %1212 = vmatpush1.msra.mxu0 0.0
    %1213 = vmatprep.subr.mxu0 0.0
    %1214 = vmatpush1.msra.mxu0 0.0
    %1215 = vmatprep.subr.mxu0 0.0
    %1216 = vmatpush1.msra.mxu0 0.0
    %1217 = vmatprep.subr.mxu0 0.0
    %1218 = vmatpush1.msra.mxu0 0.0
    %1219 = vmatprep.subr.mxu0 0.0
    %1220 = vmatpush1.msra.mxu0 0.0
    %1221 = vmatprep.subr.mxu0 0.0
    %1222 = vmatpush1.msra.mxu0 0.0
    %1223 = vmatprep.subr.mxu0 0.0
    %1224 = vmatpush1.msra.mxu0 0.0
    %1225 = vmatprep.subr.mxu0 0.0
    %1226 = vmatpush1.msra.mxu0 0.0
    %1227 = vmatprep.subr.mxu0 0.0
    %1228 = vmatpush1.msra.mxu0 0.0
    %1229 = vmatprep.subr.mxu0 0.0
    %1230 = vmatpush1.msra.mxu0 0.0
    %1231 = vmatprep.mubr.f32.mxu0 0.0
    %v1232 = vand.u32 %v781, 4294901760
    %v1233 = vsub.f32 %v781, %v1232
    %v1234 = vand.u32 %v1233, 4294901760
    %1235 = vmatmul.mubr.f32.gmra.mrb[0].mxu0 %v1234
    %v1236 = vpop.f32.mrb[0].mxu0
    %v1237 = vadd.f32 %v1125, %v1236
    %v1238 = vpop.f32.mrb[0].mxu0
    %1239 = vmatprep.mubr.f32.mxu0 0.0
    %v1240 = vand.u32 %v784, 4294901760
    %v1241 = vsub.f32 %v784, %v1240
    %v1242 = vand.u32 %v1241, 4294901760
    %1243 = vmatmul.mubr.f32.gmra.mrb[0].mxu0 %v1242
    %v1244 = vpop.f32.mrb[0].mxu0
    %v1245 = vadd.f32 %v1132, %v1244
    %v1246 = vpop.f32.mrb[0].mxu0
    %1247 = vmatprep.mubr.f32.mxu0 0.0
    %v1248 = vand.u32 %v787, 4294901760
    %v1249 = vsub.f32 %v787, %v1248
    %v1250 = vand.u32 %v1249, 4294901760
    %1251 = vmatmul.mubr.f32.gmra.mrb[0].mxu0 %v1250
    %v1252 = vpop.f32.mrb[0].mxu0
    %v1253 = vadd.f32 %v1139, %v1252
    %v1254 = vpop.f32.mrb[0].mxu0
    %1255 = vmatprep.mubr.f32.mxu0 0.0
    %v1256 = vand.u32 %v790, 4294901760
    %v1257 = vsub.f32 %v790, %v1256
    %v1258 = vand.u32 %v1257, 4294901760
    %1259 = vmatmul.mubr.f32.gmra.mrb[0].mxu0 %v1258
    %v1260 = vpop.f32.mrb[0].mxu0
    %v1261 = vadd.f32 %v1146, %v1260
    %v1262 = vpop.f32.mrb[0].mxu0
    %1263 = vmatprep.mubr.f32.mxu0 0.0
    %v1264 = vand.u32 %v793, 4294901760
    %v1265 = vsub.f32 %v793, %v1264
    %v1266 = vand.u32 %v1265, 4294901760
    %1267 = vmatmul.mubr.f32.gmra.mrb[0].mxu0 %v1266
    %v1268 = vpop.f32.mrb[0].mxu0
    %v1269 = vadd.f32 %v1153, %v1268
    %v1270 = vpop.f32.mrb[0].mxu0
    %1271 = vmatprep.mubr.f32.mxu0 0.0
    %v1272 = vand.u32 %v796, 4294901760
    %v1273 = vsub.f32 %v796, %v1272
    %v1274 = vand.u32 %v1273, 4294901760
    %1275 = vmatmul.mubr.f32.gmra.mrb[0].mxu0 %v1274
    %v1276 = vpop.f32.mrb[0].mxu0
    %v1277 = vadd.f32 %v1160, %v1276
    %v1278 = vpop.f32.mrb[0].mxu0
    %1279 = vdwg.mxu0
    %1280 = vmatprep.subr.mxu0 0.0
    %v1281 = vand.u32 %v769, 4294901760
    %v1282 = vsub.f32 %v769, %v1281
    %v1283 = vand.u32 %v1282, 4294901760
    %1284 = vmatpush1.msra.mxu0 %v1283
    %1285 = vmatprep.subr.mxu0 0.0
    %v1286 = vand.u32 %v770, 4294901760
    %v1287 = vsub.f32 %v770, %v1286
    %v1288 = vand.u32 %v1287, 4294901760
    %1289 = vmatpush1.msra.mxu0 %v1288
    %1290 = vmatprep.subr.mxu0 0.0
    %v1291 = vand.u32 %v771, 4294901760
    %v1292 = vsub.f32 %v771, %v1291
    %v1293 = vand.u32 %v1292, 4294901760
    %1294 = vmatpush1.msra.mxu0 %v1293
    %1295 = vmatprep.subr.mxu0 0.0
    %v1296 = vand.u32 %v772, 4294901760
    %v1297 = vsub.f32 %v772, %v1296
    %v1298 = vand.u32 %v1297, 4294901760
    %1299 = vmatpush1.msra.mxu0 %v1298
    %1300 = vmatprep.subr.mxu0 0.0
    %1301 = vmatpush1.msra.mxu0 0.0
    %1302 = vmatprep.subr.mxu0 0.0
    %1303 = vmatpush1.msra.mxu0 0.0
    %1304 = vmatprep.subr.mxu0 0.0
    %1305 = vmatpush1.msra.mxu0 0.0
    %1306 = vmatprep.subr.mxu0 0.0
    %1307 = vmatpush1.msra.mxu0 0.0
    %1308 = vmatprep.subr.mxu0 0.0
    %1309 = vmatpush1.msra.mxu0 0.0
    %1310 = vmatprep.subr.mxu0 0.0
    %1311 = vmatpush1.msra.mxu0 0.0
    %1312 = vmatprep.subr.mxu0 0.0
    %1313 = vmatpush1.msra.mxu0 0.0
    %1314 = vmatprep.subr.mxu0 0.0
    %1315 = vmatpush1.msra.mxu0 0.0
    %1316 = vmatprep.subr.mxu0 0.0
    %1317 = vmatpush1.msra.mxu0 0.0
    %1318 = vmatprep.subr.mxu0 0.0
    %1319 = vmatpush1.msra.mxu0 0.0
    %1320 = vmatprep.subr.mxu0 0.0
    %1321 = vmatpush1.msra.mxu0 0.0
    %1322 = vmatprep.subr.mxu0 0.0
    %1323 = vmatpush1.msra.mxu0 0.0
    %1324 = vmatprep.subr.mxu0 0.0
    %1325 = vmatpush1.msra.mxu0 0.0
    %1326 = vmatprep.subr.mxu0 0.0
    %1327 = vmatpush1.msra.mxu0 0.0
    %1328 = vmatprep.subr.mxu0 0.0
    %1329 = vmatpush1.msra.mxu0 0.0
    %1330 = vmatprep.subr.mxu0 0.0
    %1331 = vmatpush1.msra.mxu0 0.0
    %1332 = vmatprep.subr.mxu0 0.0
    %1333 = vmatpush1.msra.mxu0 0.0
    %1334 = vmatprep.subr.mxu0 0.0
    %1335 = vmatpush1.msra.mxu0 0.0
    %1336 = vmatprep.subr.mxu0 0.0
    %1337 = vmatpush1.msra.mxu0 0.0
    %1338 = vmatprep.subr.mxu0 0.0
    %1339 = vmatpush1.msra.mxu0 0.0
    %1340 = vmatprep.subr.mxu0 0.0
    %1341 = vmatpush1.msra.mxu0 0.0
    %1342 = vmatprep.subr.mxu0 0.0
    %1343 = vmatpush1.msra.mxu0 0.0
    %1344 = vmatprep.subr.mxu0 0.0
    %1345 = vmatpush1.msra.mxu0 0.0
    %1346 = vmatprep.subr.mxu0 0.0
    %1347 = vmatpush1.msra.mxu0 0.0
    %1348 = vmatprep.subr.mxu0 0.0
    %1349 = vmatpush1.msra.mxu0 0.0
    %1350 = vmatprep.subr.mxu0 0.0
    %1351 = vmatpush1.msra.mxu0 0.0
    %1352 = vmatprep.subr.mxu0 0.0
    %1353 = vmatpush1.msra.mxu0 0.0
    %1354 = vmatprep.subr.mxu0 0.0
    %1355 = vmatpush1.msra.mxu0 0.0
    %1356 = vmatprep.mubr.f32.mxu0 0.0
    %v1357 = vand.u32 %v781, 4294901760
    %1358 = vmatmul.mubr.f32.gmra.mrb[0].mxu0 %v1357
    %v1359 = vpop.f32.mrb[0].mxu0
    %v1360 = vadd.f32 %v1237, %v1359
    %v1361 = vpop.f32.mrb[0].mxu0
    %1362 = vmatprep.mubr.f32.mxu0 0.0
    %v1363 = vand.u32 %v784, 4294901760
    %1364 = vmatmul.mubr.f32.gmra.mrb[0].mxu0 %v1363
    %v1365 = vpop.f32.mrb[0].mxu0
    %v1366 = vadd.f32 %v1245, %v1365
    %v1367 = vpop.f32.mrb[0].mxu0
    %1368 = vmatprep.mubr.f32.mxu0 0.0
    %v1369 = vand.u32 %v787, 4294901760
    %1370 = vmatmul.mubr.f32.gmra.mrb[0].mxu0 %v1369
    %v1371 = vpop.f32.mrb[0].mxu0
    %v1372 = vadd.f32 %v1253, %v1371
    %v1373 = vpop.f32.mrb[0].mxu0
    %1374 = vmatprep.mubr.f32.mxu0 0.0
    %v1375 = vand.u32 %v790, 4294901760
    %1376 = vmatmul.mubr.f32.gmra.mrb[0].mxu0 %v1375
    %v1377 = vpop.f32.mrb[0].mxu0
    %v1378 = vadd.f32 %v1261, %v1377
    %v1379 = vpop.f32.mrb[0].mxu0
    %1380 = vmatprep.mubr.f32.mxu0 0.0
    %v1381 = vand.u32 %v793, 4294901760
    %1382 = vmatmul.mubr.f32.gmra.mrb[0].mxu0 %v1381
    %v1383 = vpop.f32.mrb[0].mxu0
    %v1384 = vadd.f32 %v1269, %v1383
    %v1385 = vpop.f32.mrb[0].mxu0
    %1386 = vmatprep.mubr.f32.mxu0 0.0
    %v1387 = vand.u32 %v796, 4294901760
    %1388 = vmatmul.mubr.f32.gmra.mrb[0].mxu0 %v1387
    %v1389 = vpop.f32.mrb[0].mxu0
    %v1390 = vadd.f32 %v1277, %v1389
    %v1391 = vpop.f32.mrb[0].mxu0
    %1392 = vdwg.mxu0
    %1393 = vmatprep.subr.mxu0 0.0
    %v1394 = vand.u32 %v769, 4294901760
    %1395 = vmatpush1.msra.mxu0 %v1394
    %1396 = vmatprep.subr.mxu0 0.0
    %v1397 = vand.u32 %v770, 4294901760
    %1398 = vmatpush1.msra.mxu0 %v1397
    %1399 = vmatprep.subr.mxu0 0.0
    %v1400 = vand.u32 %v771, 4294901760
    %1401 = vmatpush1.msra.mxu0 %v1400
    %1402 = vmatprep.subr.mxu0 0.0
    %v1403 = vand.u32 %v772, 4294901760
    %1404 = vmatpush1.msra.mxu0 %v1403
    %1405 = vmatprep.subr.mxu0 0.0
    %1406 = vmatpush1.msra.mxu0 0.0
    %1407 = vmatprep.subr.mxu0 0.0
    %1408 = vmatpush1.msra.mxu0 0.0
    %1409 = vmatprep.subr.mxu0 0.0
    %1410 = vmatpush1.msra.mxu0 0.0
    %1411 = vmatprep.subr.mxu0 0.0
    %1412 = vmatpush1.msra.mxu0 0.0
    %1413 = vmatprep.subr.mxu0 0.0
    %1414 = vmatpush1.msra.mxu0 0.0
    %1415 = vmatprep.subr.mxu0 0.0
    %1416 = vmatpush1.msra.mxu0 0.0
    %1417 = vmatprep.subr.mxu0 0.0
    %1418 = vmatpush1.msra.mxu0 0.0
    %1419 = vmatprep.subr.mxu0 0.0
    %1420 = vmatpush1.msra.mxu0 0.0
    %1421 = vmatprep.subr.mxu0 0.0
    %1422 = vmatpush1.msra.mxu0 0.0
    %1423 = vmatprep.subr.mxu0 0.0
    %1424 = vmatpush1.msra.mxu0 0.0
    %1425 = vmatprep.subr.mxu0 0.0
    %1426 = vmatpush1.msra.mxu0 0.0
    %1427 = vmatprep.subr.mxu0 0.0
    %1428 = vmatpush1.msra.mxu0 0.0
    %1429 = vmatprep.subr.mxu0 0.0
    %1430 = vmatpush1.msra.mxu0 0.0
    %1431 = vmatprep.subr.mxu0 0.0
    %1432 = vmatpush1.msra.mxu0 0.0
    %1433 = vmatprep.subr.mxu0 0.0
    %1434 = vmatpush1.msra.mxu0 0.0
    %1435 = vmatprep.subr.mxu0 0.0
    %1436 = vmatpush1.msra.mxu0 0.0
    %1437 = vmatprep.subr.mxu0 0.0
    %1438 = vmatpush1.msra.mxu0 0.0
    %1439 = vmatprep.subr.mxu0 0.0
    %1440 = vmatpush1.msra.mxu0 0.0
    %1441 = vmatprep.subr.mxu0 0.0
    %1442 = vmatpush1.msra.mxu0 0.0
    %1443 = vmatprep.subr.mxu0 0.0
    %1444 = vmatpush1.msra.mxu0 0.0
    %1445 = vmatprep.subr.mxu0 0.0
    %1446 = vmatpush1.msra.mxu0 0.0
    %1447 = vmatprep.subr.mxu0 0.0
    %1448 = vmatpush1.msra.mxu0 0.0
    %1449 = vmatprep.subr.mxu0 0.0
    %1450 = vmatpush1.msra.mxu0 0.0
    %1451 = vmatprep.subr.mxu0 0.0
    %1452 = vmatpush1.msra.mxu0 0.0
    %1453 = vmatprep.subr.mxu0 0.0
    %1454 = vmatpush1.msra.mxu0 0.0
    %1455 = vmatprep.subr.mxu0 0.0
    %1456 = vmatpush1.msra.mxu0 0.0
    %1457 = vmatprep.subr.mxu0 0.0
    %1458 = vmatpush1.msra.mxu0 0.0
    %1459 = vmatprep.subr.mxu0 0.0
    %1460 = vmatpush1.msra.mxu0 0.0
    %1461 = vmatprep.mubr.f32.mxu0 0.0
    %v1462 = vand.u32 %v781, 4294901760
    %1463 = vmatmul.mubr.f32.gmra.mrb[0].mxu0 %v1462
    %v1464 = vpop.f32.mrb[0].mxu0
    %v1465 = vadd.f32 %v1360, %v1464
    %v1466 = vpop.f32.mrb[0].mxu0
    %1467 = vmatprep.mubr.f32.mxu0 0.0
    %v1468 = vand.u32 %v784, 4294901760
    %1469 = vmatmul.mubr.f32.gmra.mrb[0].mxu0 %v1468
    %v1470 = vpop.f32.mrb[0].mxu0
    %v1471 = vadd.f32 %v1366, %v1470
    %v1472 = vpop.f32.mrb[0].mxu0
    %1473 = vmatprep.mubr.f32.mxu0 0.0
    %v1474 = vand.u32 %v787, 4294901760
    %1475 = vmatmul.mubr.f32.gmra.mrb[0].mxu0 %v1474
    %v1476 = vpop.f32.mrb[0].mxu0
    %v1477 = vadd.f32 %v1372, %v1476
    %v1478 = vpop.f32.mrb[0].mxu0
    %1479 = vmatprep.mubr.f32.mxu0 0.0
    %v1480 = vand.u32 %v790, 4294901760
    %1481 = vmatmul.mubr.f32.gmra.mrb[0].mxu0 %v1480
    %v1482 = vpop.f32.mrb[0].mxu0
    %v1483 = vadd.f32 %v1378, %v1482
    %v1484 = vpop.f32.mrb[0].mxu0
    %1485 = vmatprep.mubr.f32.mxu0 0.0
    %v1486 = vand.u32 %v793, 4294901760
    %1487 = vmatmul.mubr.f32.gmra.mrb[0].mxu0 %v1486
    %v1488 = vpop.f32.mrb[0].mxu0
    %v1489 = vadd.f32 %v1384, %v1488
    %v1490 = vpop.f32.mrb[0].mxu0
    %1491 = vmatprep.mubr.f32.mxu0 0.0
    %v1492 = vand.u32 %v796, 4294901760
    %1493 = vmatmul.mubr.f32.gmra.mrb[0].mxu0 %v1492
    %v1494 = vpop.f32.mrb[0].mxu0
    %v1495 = vadd.f32 %v1390, %v1494
    %v1496 = vpop.f32.mrb[0].mxu0
    %1497 = vdwg.mxu0
    %v1498 = vmax.f32 %v1465, 0.0
    %v1499 = vmax.f32 %v1471, 0.0
    %v1500 = vmax.f32 %v1477, 0.0
    %v1501 = vmax.f32 %v1483, 0.0
    %v1502 = vmax.f32 %v1489, 0.0
    %v1503 = vmax.f32 %v1495, 0.0
    %v1504 = vld [vmem:[%s5] sm:$0xff]
    %v1505 = vld [vmem:[%s5 + $0x8] sm:$0xff]
    %v1506 = vld [vmem:[%s5 + $0x10] sm:$0xff]
    %v1507 = vld [vmem:[%s5 + $0x18] sm:$0xff]
    %v1508 = vld [vmem:[%s6] sm:$0x1]
    %v1510 = vlaneseq
    %v1511 = vshrl.u32 %v1510, 7
    %v1512 = vsub.s32 0, %v1511
    %v1513 = vrot.slane %v1508, %v1512
    %v1516 = vsel %vm44, %v1498, 0
    %v1519 = vsel %vm44, %v1499, 0
    %v1522 = vsel %vm44, %v1500, 0
    %v1525 = vsel %vm44, %v1501, 0
    %v1528 = vsel %vm44, %v1502, 0
    %v1531 = vsel %vm44, %v1503, 0
    %1533 = vmatprep.subr.mxu0 0.0
    %v1534 = vand.u32 %v1504, 4294901760
    %1535 = vmatpush1.msra.mxu0 %v1534
    %1536 = vmatprep.subr.mxu0 0.0
    %v1537 = vand.u32 %v1505, 4294901760
    %1538 = vmatpush1.msra.mxu0 %v1537
    %1539 = vmatprep.subr.mxu0 0.0
    %v1540 = vand.u32 %v1506, 4294901760
    %1541 = vmatpush1.msra.mxu0 %v1540
    %1542 = vmatprep.subr.mxu0 0.0
    %v1543 = vand.u32 %v1507, 4294901760
    %1544 = vmatpush1.msra.mxu0 %v1543
    %1545 = vmatprep.subr.mxu0 0.0
    %1546 = vmatpush1.msra.mxu0 0.0
    %1547 = vmatprep.subr.mxu0 0.0
    %1548 = vmatpush1.msra.mxu0 0.0
    %1549 = vmatprep.subr.mxu0 0.0
    %1550 = vmatpush1.msra.mxu0 0.0
    %1551 = vmatprep.subr.mxu0 0.0
    %1552 = vmatpush1.msra.mxu0 0.0
    %1553 = vmatprep.subr.mxu0 0.0
    %1554 = vmatpush1.msra.mxu0 0.0
    %1555 = vmatprep.subr.mxu0 0.0
    %1556 = vmatpush1.msra.mxu0 0.0
    %1557 = vmatprep.subr.mxu0 0.0
    %1558 = vmatpush1.msra.mxu0 0.0
    %1559 = vmatprep.subr.mxu0 0.0
    %1560 = vmatpush1.msra.mxu0 0.0
    %1561 = vmatprep.subr.mxu0 0.0
    %1562 = vmatpush1.msra.mxu0 0.0
    %1563 = vmatprep.subr.mxu0 0.0
    %1564 = vmatpush1.msra.mxu0 0.0
    %1565 = vmatprep.subr.mxu0 0.0
    %1566 = vmatpush1.msra.mxu0 0.0
    %1567 = vmatprep.subr.mxu0 0.0
    %1568 = vmatpush1.msra.mxu0 0.0
    %1569 = vmatprep.subr.mxu0 0.0
    %1570 = vmatpush1.msra.mxu0 0.0
    %1571 = vmatprep.subr.mxu0 0.0
    %1572 = vmatpush1.msra.mxu0 0.0
    %1573 = vmatprep.subr.mxu0 0.0
    %1574 = vmatpush1.msra.mxu0 0.0
    %1575 = vmatprep.subr.mxu0 0.0
    %1576 = vmatpush1.msra.mxu0 0.0
    %1577 = vmatprep.subr.mxu0 0.0
    %1578 = vmatpush1.msra.mxu0 0.0
    %1579 = vmatprep.subr.mxu0 0.0
    %1580 = vmatpush1.msra.mxu0 0.0
    %1581 = vmatprep.subr.mxu0 0.0
    %1582 = vmatpush1.msra.mxu0 0.0
    %1583 = vmatprep.subr.mxu0 0.0
    %1584 = vmatpush1.msra.mxu0 0.0
    %1585 = vmatprep.subr.mxu0 0.0
    %1586 = vmatpush1.msra.mxu0 0.0
    %1587 = vmatprep.subr.mxu0 0.0
    %1588 = vmatpush1.msra.mxu0 0.0
    %1589 = vmatprep.subr.mxu0 0.0
    %1590 = vmatpush1.msra.mxu0 0.0
    %1591 = vmatprep.subr.mxu0 0.0
    %1592 = vmatpush1.msra.mxu0 0.0
    %1593 = vmatprep.subr.mxu0 0.0
    %1594 = vmatpush1.msra.mxu0 0.0
    %1595 = vmatprep.subr.mxu0 0.0
    %1596 = vmatpush1.msra.mxu0 0.0
    %1597 = vmatprep.subr.mxu0 0.0
    %1598 = vmatpush1.msra.mxu0 0.0
    %1599 = vmatprep.subr.mxu0 0.0
    %1600 = vmatpush1.msra.mxu0 0.0
    %1601 = vmatprep.mubr.f32.mxu0 0.0
    %v1602 = vand.u32 %v1516, 4294901760
    %v1603 = vsub.f32 %v1516, %v1602
    %v1604 = vand.u32 %v1603, 4294901760
    %v1605 = vsub.f32 %v1603, %v1604
    %v1606 = vand.u32 %v1605, 4294901760
    %1607 = vmatmul.mubr.f32.gmra.mrb[0].mxu0 %v1606
    %v1608 = vpop.f32.mrb[0].mxu0
    %v1609 = vadd.f32 %v1513, %v1608
    %v1610 = vpop.f32.mrb[0].mxu0
    %1611 = vmatprep.mubr.f32.mxu0 0.0
    %v1612 = vand.u32 %v1519, 4294901760
    %v1613 = vsub.f32 %v1519, %v1612
    %v1614 = vand.u32 %v1613, 4294901760
    %v1615 = vsub.f32 %v1613, %v1614
    %v1616 = vand.u32 %v1615, 4294901760
    %1617 = vmatmul.mubr.f32.gmra.mrb[0].mxu0 %v1616
    %v1618 = vpop.f32.mrb[0].mxu0
    %v1619 = vadd.f32 %v1513, %v1618
    %v1620 = vpop.f32.mrb[0].mxu0
    %1621 = vmatprep.mubr.f32.mxu0 0.0
    %v1622 = vand.u32 %v1522, 4294901760
    %v1623 = vsub.f32 %v1522, %v1622
    %v1624 = vand.u32 %v1623, 4294901760
    %v1625 = vsub.f32 %v1623, %v1624
    %v1626 = vand.u32 %v1625, 4294901760
    %1627 = vmatmul.mubr.f32.gmra.mrb[0].mxu0 %v1626
    %v1628 = vpop.f32.mrb[0].mxu0
    %v1629 = vadd.f32 %v1513, %v1628
    %v1630 = vpop.f32.mrb[0].mxu0
    %1631 = vmatprep.mubr.f32.mxu0 0.0
    %v1632 = vand.u32 %v1525, 4294901760
    %v1633 = vsub.f32 %v1525, %v1632
    %v1634 = vand.u32 %v1633, 4294901760
    %v1635 = vsub.f32 %v1633, %v1634
    %v1636 = vand.u32 %v1635, 4294901760
    %1637 = vmatmul.mubr.f32.gmra.mrb[0].mxu0 %v1636
    %v1638 = vpop.f32.mrb[0].mxu0
    %v1639 = vadd.f32 %v1513, %v1638
    %v1640 = vpop.f32.mrb[0].mxu0
    %1641 = vmatprep.mubr.f32.mxu0 0.0
    %v1642 = vand.u32 %v1528, 4294901760
    %v1643 = vsub.f32 %v1528, %v1642
    %v1644 = vand.u32 %v1643, 4294901760
    %v1645 = vsub.f32 %v1643, %v1644
    %v1646 = vand.u32 %v1645, 4294901760
    %1647 = vmatmul.mubr.f32.gmra.mrb[0].mxu0 %v1646
    %v1648 = vpop.f32.mrb[0].mxu0
    %v1649 = vadd.f32 %v1513, %v1648
    %v1650 = vpop.f32.mrb[0].mxu0
    %1651 = vmatprep.mubr.f32.mxu0 0.0
    %v1652 = vand.u32 %v1531, 4294901760
    %v1653 = vsub.f32 %v1531, %v1652
    %v1654 = vand.u32 %v1653, 4294901760
    %v1655 = vsub.f32 %v1653, %v1654
    %v1656 = vand.u32 %v1655, 4294901760
    %1657 = vmatmul.mubr.f32.gmra.mrb[0].mxu0 %v1656
    %v1658 = vpop.f32.mrb[0].mxu0
    %v1659 = vadd.f32 %v1513, %v1658
    %v1660 = vpop.f32.mrb[0].mxu0
    %1661 = vdwg.mxu0
    %1662 = vmatprep.subr.mxu0 0.0
    %v1663 = vand.u32 %v1504, 4294901760
    %v1664 = vsub.f32 %v1504, %v1663
    %v1665 = vand.u32 %v1664, 4294901760
    %v1666 = vsub.f32 %v1664, %v1665
    %v1667 = vand.u32 %v1666, 4294901760
    %1668 = vmatpush1.msra.mxu0 %v1667
    %1669 = vmatprep.subr.mxu0 0.0
    %v1670 = vand.u32 %v1505, 4294901760
    %v1671 = vsub.f32 %v1505, %v1670
    %v1672 = vand.u32 %v1671, 4294901760
    %v1673 = vsub.f32 %v1671, %v1672
    %v1674 = vand.u32 %v1673, 4294901760
    %1675 = vmatpush1.msra.mxu0 %v1674
    %1676 = vmatprep.subr.mxu0 0.0
    %v1677 = vand.u32 %v1506, 4294901760
    %v1678 = vsub.f32 %v1506, %v1677
    %v1679 = vand.u32 %v1678, 4294901760
    %v1680 = vsub.f32 %v1678, %v1679
    %v1681 = vand.u32 %v1680, 4294901760
    %1682 = vmatpush1.msra.mxu0 %v1681
    %1683 = vmatprep.subr.mxu0 0.0
    %v1684 = vand.u32 %v1507, 4294901760
    %v1685 = vsub.f32 %v1507, %v1684
    %v1686 = vand.u32 %v1685, 4294901760
    %v1687 = vsub.f32 %v1685, %v1686
    %v1688 = vand.u32 %v1687, 4294901760
    %1689 = vmatpush1.msra.mxu0 %v1688
    %1690 = vmatprep.subr.mxu0 0.0
    %1691 = vmatpush1.msra.mxu0 0.0
    %1692 = vmatprep.subr.mxu0 0.0
    %1693 = vmatpush1.msra.mxu0 0.0
    %1694 = vmatprep.subr.mxu0 0.0
    %1695 = vmatpush1.msra.mxu0 0.0
    %1696 = vmatprep.subr.mxu0 0.0
    %1697 = vmatpush1.msra.mxu0 0.0
    %1698 = vmatprep.subr.mxu0 0.0
    %1699 = vmatpush1.msra.mxu0 0.0
    %1700 = vmatprep.subr.mxu0 0.0
    %1701 = vmatpush1.msra.mxu0 0.0
    %1702 = vmatprep.subr.mxu0 0.0
    %1703 = vmatpush1.msra.mxu0 0.0
    %1704 = vmatprep.subr.mxu0 0.0
    %1705 = vmatpush1.msra.mxu0 0.0
    %1706 = vmatprep.subr.mxu0 0.0
    %1707 = vmatpush1.msra.mxu0 0.0
    %1708 = vmatprep.subr.mxu0 0.0
    %1709 = vmatpush1.msra.mxu0 0.0
    %1710 = vmatprep.subr.mxu0 0.0
    %1711 = vmatpush1.msra.mxu0 0.0
    %1712 = vmatprep.subr.mxu0 0.0
    %1713 = vmatpush1.msra.mxu0 0.0
    %1714 = vmatprep.subr.mxu0 0.0
    %1715 = vmatpush1.msra.mxu0 0.0
    %1716 = vmatprep.subr.mxu0 0.0
    %1717 = vmatpush1.msra.mxu0 0.0
    %1718 = vmatprep.subr.mxu0 0.0
    %1719 = vmatpush1.msra.mxu0 0.0
    %1720 = vmatprep.subr.mxu0 0.0
    %1721 = vmatpush1.msra.mxu0 0.0
    %1722 = vmatprep.subr.mxu0 0.0
    %1723 = vmatpush1.msra.mxu0 0.0
    %1724 = vmatprep.subr.mxu0 0.0
    %1725 = vmatpush1.msra.mxu0 0.0
    %1726 = vmatprep.subr.mxu0 0.0
    %1727 = vmatpush1.msra.mxu0 0.0
    %1728 = vmatprep.subr.mxu0 0.0
    %1729 = vmatpush1.msra.mxu0 0.0
    %1730 = vmatprep.subr.mxu0 0.0
    %1731 = vmatpush1.msra.mxu0 0.0
    %1732 = vmatprep.subr.mxu0 0.0
    %1733 = vmatpush1.msra.mxu0 0.0
    %1734 = vmatprep.subr.mxu0 0.0
    %1735 = vmatpush1.msra.mxu0 0.0
    %1736 = vmatprep.subr.mxu0 0.0
    %1737 = vmatpush1.msra.mxu0 0.0
    %1738 = vmatprep.subr.mxu0 0.0
    %1739 = vmatpush1.msra.mxu0 0.0
    %1740 = vmatprep.subr.mxu0 0.0
    %1741 = vmatpush1.msra.mxu0 0.0
    %1742 = vmatprep.subr.mxu0 0.0
    %1743 = vmatpush1.msra.mxu0 0.0
    %1744 = vmatprep.subr.mxu0 0.0
    %1745 = vmatpush1.msra.mxu0 0.0
    %1746 = vmatprep.mubr.f32.mxu0 0.0
    %v1747 = vand.u32 %v1516, 4294901760
    %1748 = vmatmul.mubr.f32.gmra.mrb[0].mxu0 %v1747
    %v1749 = vpop.f32.mrb[0].mxu0
    %v1750 = vadd.f32 %v1609, %v1749
    %v1751 = vpop.f32.mrb[0].mxu0
    %1752 = vmatprep.mubr.f32.mxu0 0.0
    %v1753 = vand.u32 %v1519, 4294901760
    %1754 = vmatmul.mubr.f32.gmra.mrb[0].mxu0 %v1753
    %v1755 = vpop.f32.mrb[0].mxu0
    %v1756 = vadd.f32 %v1619, %v1755
    %v1757 = vpop.f32.mrb[0].mxu0
    %1758 = vmatprep.mubr.f32.mxu0 0.0
    %v1759 = vand.u32 %v1522, 4294901760
    %1760 = vmatmul.mubr.f32.gmra.mrb[0].mxu0 %v1759
    %v1761 = vpop.f32.mrb[0].mxu0
    %v1762 = vadd.f32 %v1629, %v1761
    %v1763 = vpop.f32.mrb[0].mxu0
    %1764 = vmatprep.mubr.f32.mxu0 0.0
    %v1765 = vand.u32 %v1525, 4294901760
    %1766 = vmatmul.mubr.f32.gmra.mrb[0].mxu0 %v1765
    %v1767 = vpop.f32.mrb[0].mxu0
    %v1768 = vadd.f32 %v1639, %v1767
    %v1769 = vpop.f32.mrb[0].mxu0
    %1770 = vmatprep.mubr.f32.mxu0 0.0
    %v1771 = vand.u32 %v1528, 4294901760
    %1772 = vmatmul.mubr.f32.gmra.mrb[0].mxu0 %v1771
    %v1773 = vpop.f32.mrb[0].mxu0
    %v1774 = vadd.f32 %v1649, %v1773
    %v1775 = vpop.f32.mrb[0].mxu0
    %1776 = vmatprep.mubr.f32.mxu0 0.0
    %v1777 = vand.u32 %v1531, 4294901760
    %1778 = vmatmul.mubr.f32.gmra.mrb[0].mxu0 %v1777
    %v1779 = vpop.f32.mrb[0].mxu0
    %v1780 = vadd.f32 %v1659, %v1779
    %v1781 = vpop.f32.mrb[0].mxu0
    %1782 = vdwg.mxu0
    %1783 = vmatprep.subr.mxu0 0.0
    %v1784 = vand.u32 %v1504, 4294901760
    %v1785 = vsub.f32 %v1504, %v1784
    %1786 = vmatpush1.msra.mxu0 %v1785
    %1787 = vmatprep.subr.mxu0 0.0
    %v1788 = vand.u32 %v1505, 4294901760
    %v1789 = vsub.f32 %v1505, %v1788
    %1790 = vmatpush1.msra.mxu0 %v1789
    %1791 = vmatprep.subr.mxu0 0.0
    %v1792 = vand.u32 %v1506, 4294901760
    %v1793 = vsub.f32 %v1506, %v1792
    %1794 = vmatpush1.msra.mxu0 %v1793
    %1795 = vmatprep.subr.mxu0 0.0
    %v1796 = vand.u32 %v1507, 4294901760
    %v1797 = vsub.f32 %v1507, %v1796
    %1798 = vmatpush1.msra.mxu0 %v1797
    %1799 = vmatprep.subr.mxu0 0.0
    %1800 = vmatpush1.msra.mxu0 0.0
    %1801 = vmatprep.subr.mxu0 0.0
    %1802 = vmatpush1.msra.mxu0 0.0
    %1803 = vmatprep.subr.mxu0 0.0
    %1804 = vmatpush1.msra.mxu0 0.0
    %1805 = vmatprep.subr.mxu0 0.0
    %1806 = vmatpush1.msra.mxu0 0.0
    %1807 = vmatprep.subr.mxu0 0.0
    %1808 = vmatpush1.msra.mxu0 0.0
    %1809 = vmatprep.subr.mxu0 0.0
    %1810 = vmatpush1.msra.mxu0 0.0
    %1811 = vmatprep.subr.mxu0 0.0
    %1812 = vmatpush1.msra.mxu0 0.0
    %1813 = vmatprep.subr.mxu0 0.0
    %1814 = vmatpush1.msra.mxu0 0.0
    %1815 = vmatprep.subr.mxu0 0.0
    %1816 = vmatpush1.msra.mxu0 0.0
    %1817 = vmatprep.subr.mxu0 0.0
    %1818 = vmatpush1.msra.mxu0 0.0
    %1819 = vmatprep.subr.mxu0 0.0
    %1820 = vmatpush1.msra.mxu0 0.0
    %1821 = vmatprep.subr.mxu0 0.0
    %1822 = vmatpush1.msra.mxu0 0.0
    %1823 = vmatprep.subr.mxu0 0.0
    %1824 = vmatpush1.msra.mxu0 0.0
    %1825 = vmatprep.subr.mxu0 0.0
    %1826 = vmatpush1.msra.mxu0 0.0
    %1827 = vmatprep.subr.mxu0 0.0
    %1828 = vmatpush1.msra.mxu0 0.0
    %1829 = vmatprep.subr.mxu0 0.0
    %1830 = vmatpush1.msra.mxu0 0.0
    %1831 = vmatprep.subr.mxu0 0.0
    %1832 = vmatpush1.msra.mxu0 0.0
    %1833 = vmatprep.subr.mxu0 0.0
    %1834 = vmatpush1.msra.mxu0 0.0
    %1835 = vmatprep.subr.mxu0 0.0
    %1836 = vmatpush1.msra.mxu0 0.0
    %1837 = vmatprep.subr.mxu0 0.0
    %1838 = vmatpush1.msra.mxu0 0.0
    %1839 = vmatprep.subr.mxu0 0.0
    %1840 = vmatpush1.msra.mxu0 0.0
    %1841 = vmatprep.subr.mxu0 0.0
    %1842 = vmatpush1.msra.mxu0 0.0
    %1843 = vmatprep.subr.mxu0 0.0
    %1844 = vmatpush1.msra.mxu0 0.0
    %1845 = vmatprep.subr.mxu0 0.0
    %1846 = vmatpush1.msra.mxu0 0.0
    %1847 = vmatprep.subr.mxu0 0.0
    %1848 = vmatpush1.msra.mxu0 0.0
    %1849 = vmatprep.subr.mxu0 0.0
    %1850 = vmatpush1.msra.mxu0 0.0
    %1851 = vmatprep.subr.mxu0 0.0
    %1852 = vmatpush1.msra.mxu0 0.0
    %1853 = vmatprep.subr.mxu0 0.0
    %1854 = vmatpush1.msra.mxu0 0.0
    %1855 = vmatprep.mubr.f32.mxu0 0.0
    %v1856 = vand.u32 %v1516, 4294901760
    %v1857 = vsub.f32 %v1516, %v1856
    %1858 = vmatmul.mubr.f32.gmra.mrb[0].mxu0 %v1857
    %v1859 = vpop.f32.mrb[0].mxu0
    %v1860 = vadd.f32 %v1750, %v1859
    %v1861 = vpop.f32.mrb[0].mxu0
    %1862 = vmatprep.mubr.f32.mxu0 0.0
    %v1863 = vand.u32 %v1519, 4294901760
    %v1864 = vsub.f32 %v1519, %v1863
    %1865 = vmatmul.mubr.f32.gmra.mrb[0].mxu0 %v1864
    %v1866 = vpop.f32.mrb[0].mxu0
    %v1867 = vadd.f32 %v1756, %v1866
    %v1868 = vpop.f32.mrb[0].mxu0
    %1869 = vmatprep.mubr.f32.mxu0 0.0
    %v1870 = vand.u32 %v1522, 4294901760
    %v1871 = vsub.f32 %v1522, %v1870
    %1872 = vmatmul.mubr.f32.gmra.mrb[0].mxu0 %v1871
    %v1873 = vpop.f32.mrb[0].mxu0
    %v1874 = vadd.f32 %v1762, %v1873
    %v1875 = vpop.f32.mrb[0].mxu0
    %1876 = vmatprep.mubr.f32.mxu0 0.0
    %v1877 = vand.u32 %v1525, 4294901760
    %v1878 = vsub.f32 %v1525, %v1877
    %1879 = vmatmul.mubr.f32.gmra.mrb[0].mxu0 %v1878
    %v1880 = vpop.f32.mrb[0].mxu0
    %v1881 = vadd.f32 %v1768, %v1880
    %v1882 = vpop.f32.mrb[0].mxu0
    %1883 = vmatprep.mubr.f32.mxu0 0.0
    %v1884 = vand.u32 %v1528, 4294901760
    %v1885 = vsub.f32 %v1528, %v1884
    %1886 = vmatmul.mubr.f32.gmra.mrb[0].mxu0 %v1885
    %v1887 = vpop.f32.mrb[0].mxu0
    %v1888 = vadd.f32 %v1774, %v1887
    %v1889 = vpop.f32.mrb[0].mxu0
    %1890 = vmatprep.mubr.f32.mxu0 0.0
    %v1891 = vand.u32 %v1531, 4294901760
    %v1892 = vsub.f32 %v1531, %v1891
    %1893 = vmatmul.mubr.f32.gmra.mrb[0].mxu0 %v1892
    %v1894 = vpop.f32.mrb[0].mxu0
    %v1895 = vadd.f32 %v1780, %v1894
    %v1896 = vpop.f32.mrb[0].mxu0
    %1897 = vdwg.mxu0
    %1898 = vmatprep.subr.mxu0 0.0
    %v1899 = vand.u32 %v1504, 4294901760
    %1900 = vmatpush1.msra.mxu0 %v1899
    %1901 = vmatprep.subr.mxu0 0.0
    %v1902 = vand.u32 %v1505, 4294901760
    %1903 = vmatpush1.msra.mxu0 %v1902
    %1904 = vmatprep.subr.mxu0 0.0
    %v1905 = vand.u32 %v1506, 4294901760
    %1906 = vmatpush1.msra.mxu0 %v1905
    %1907 = vmatprep.subr.mxu0 0.0
    %v1908 = vand.u32 %v1507, 4294901760
    %1909 = vmatpush1.msra.mxu0 %v1908
    %1910 = vmatprep.subr.mxu0 0.0
    %1911 = vmatpush1.msra.mxu0 0.0
    %1912 = vmatprep.subr.mxu0 0.0
    %1913 = vmatpush1.msra.mxu0 0.0
    %1914 = vmatprep.subr.mxu0 0.0
    %1915 = vmatpush1.msra.mxu0 0.0
    %1916 = vmatprep.subr.mxu0 0.0
    %1917 = vmatpush1.msra.mxu0 0.0
    %1918 = vmatprep.subr.mxu0 0.0
    %1919 = vmatpush1.msra.mxu0 0.0
    %1920 = vmatprep.subr.mxu0 0.0
    %1921 = vmatpush1.msra.mxu0 0.0
    %1922 = vmatprep.subr.mxu0 0.0
    %1923 = vmatpush1.msra.mxu0 0.0
    %1924 = vmatprep.subr.mxu0 0.0
    %1925 = vmatpush1.msra.mxu0 0.0
    %1926 = vmatprep.subr.mxu0 0.0
    %1927 = vmatpush1.msra.mxu0 0.0
    %1928 = vmatprep.subr.mxu0 0.0
    %1929 = vmatpush1.msra.mxu0 0.0
    %1930 = vmatprep.subr.mxu0 0.0
    %1931 = vmatpush1.msra.mxu0 0.0
    %1932 = vmatprep.subr.mxu0 0.0
    %1933 = vmatpush1.msra.mxu0 0.0
    %1934 = vmatprep.subr.mxu0 0.0
    %1935 = vmatpush1.msra.mxu0 0.0
    %1936 = vmatprep.subr.mxu0 0.0
    %1937 = vmatpush1.msra.mxu0 0.0
    %1938 = vmatprep.subr.mxu0 0.0
    %1939 = vmatpush1.msra.mxu0 0.0
    %1940 = vmatprep.subr.mxu0 0.0
    %1941 = vmatpush1.msra.mxu0 0.0
    %1942 = vmatprep.subr.mxu0 0.0
    %1943 = vmatpush1.msra.mxu0 0.0
    %1944 = vmatprep.subr.mxu0 0.0
    %1945 = vmatpush1.msra.mxu0 0.0
    %1946 = vmatprep.subr.mxu0 0.0
    %1947 = vmatpush1.msra.mxu0 0.0
    %1948 = vmatprep.subr.mxu0 0.0
    %1949 = vmatpush1.msra.mxu0 0.0
    %1950 = vmatprep.subr.mxu0 0.0
    %1951 = vmatpush1.msra.mxu0 0.0
    %1952 = vmatprep.subr.mxu0 0.0
    %1953 = vmatpush1.msra.mxu0 0.0
    %1954 = vmatprep.subr.mxu0 0.0
    %1955 = vmatpush1.msra.mxu0 0.0
    %1956 = vmatprep.subr.mxu0 0.0
    %1957 = vmatpush1.msra.mxu0 0.0
    %1958 = vmatprep.subr.mxu0 0.0
    %1959 = vmatpush1.msra.mxu0 0.0
    %1960 = vmatprep.subr.mxu0 0.0
    %1961 = vmatpush1.msra.mxu0 0.0
    %1962 = vmatprep.subr.mxu0 0.0
    %1963 = vmatpush1.msra.mxu0 0.0
    %1964 = vmatprep.subr.mxu0 0.0
    %1965 = vmatpush1.msra.mxu0 0.0
    %1966 = vmatprep.mubr.f32.mxu0 0.0
    %v1967 = vand.u32 %v1516, 4294901760
    %v1968 = vsub.f32 %v1516, %v1967
    %v1969 = vand.u32 %v1968, 4294901760
    %1970 = vmatmul.mubr.f32.gmra.mrb[0].mxu0 %v1969
    %v1971 = vpop.f32.mrb[0].mxu0
    %v1972 = vadd.f32 %v1860, %v1971
    %v1973 = vpop.f32.mrb[0].mxu0
    %1974 = vmatprep.mubr.f32.mxu0 0.0
    %v1975 = vand.u32 %v1519, 4294901760
    %v1976 = vsub.f32 %v1519, %v1975
    %v1977 = vand.u32 %v1976, 4294901760
    %1978 = vmatmul.mubr.f32.gmra.mrb[0].mxu0 %v1977
    %v1979 = vpop.f32.mrb[0].mxu0
    %v1980 = vadd.f32 %v1867, %v1979
    %v1981 = vpop.f32.mrb[0].mxu0
    %1982 = vmatprep.mubr.f32.mxu0 0.0
    %v1983 = vand.u32 %v1522, 4294901760
    %v1984 = vsub.f32 %v1522, %v1983
    %v1985 = vand.u32 %v1984, 4294901760
    %1986 = vmatmul.mubr.f32.gmra.mrb[0].mxu0 %v1985
    %v1987 = vpop.f32.mrb[0].mxu0
    %v1988 = vadd.f32 %v1874, %v1987
    %v1989 = vpop.f32.mrb[0].mxu0
    %1990 = vmatprep.mubr.f32.mxu0 0.0
    %v1991 = vand.u32 %v1525, 4294901760
    %v1992 = vsub.f32 %v1525, %v1991
    %v1993 = vand.u32 %v1992, 4294901760
    %1994 = vmatmul.mubr.f32.gmra.mrb[0].mxu0 %v1993
    %v1995 = vpop.f32.mrb[0].mxu0
    %v1996 = vadd.f32 %v1881, %v1995
    %v1997 = vpop.f32.mrb[0].mxu0
    %1998 = vmatprep.mubr.f32.mxu0 0.0
    %v1999 = vand.u32 %v1528, 4294901760
    %v2000 = vsub.f32 %v1528, %v1999
    %v2001 = vand.u32 %v2000, 4294901760
    %2002 = vmatmul.mubr.f32.gmra.mrb[0].mxu0 %v2001
    %v2003 = vpop.f32.mrb[0].mxu0
    %v2004 = vadd.f32 %v1888, %v2003
    %v2005 = vpop.f32.mrb[0].mxu0
    %2006 = vmatprep.mubr.f32.mxu0 0.0
    %v2007 = vand.u32 %v1531, 4294901760
    %v2008 = vsub.f32 %v1531, %v2007
    %v2009 = vand.u32 %v2008, 4294901760
    %2010 = vmatmul.mubr.f32.gmra.mrb[0].mxu0 %v2009
    %v2011 = vpop.f32.mrb[0].mxu0
    %v2012 = vadd.f32 %v1895, %v2011
    %v2013 = vpop.f32.mrb[0].mxu0
    %2014 = vdwg.mxu0
    %2015 = vmatprep.subr.mxu0 0.0
    %v2016 = vand.u32 %v1504, 4294901760
    %v2017 = vsub.f32 %v1504, %v2016
    %v2018 = vand.u32 %v2017, 4294901760
    %2019 = vmatpush1.msra.mxu0 %v2018
    %2020 = vmatprep.subr.mxu0 0.0
    %v2021 = vand.u32 %v1505, 4294901760
    %v2022 = vsub.f32 %v1505, %v2021
    %v2023 = vand.u32 %v2022, 4294901760
    %2024 = vmatpush1.msra.mxu0 %v2023
    %2025 = vmatprep.subr.mxu0 0.0
    %v2026 = vand.u32 %v1506, 4294901760
    %v2027 = vsub.f32 %v1506, %v2026
    %v2028 = vand.u32 %v2027, 4294901760
    %2029 = vmatpush1.msra.mxu0 %v2028
    %2030 = vmatprep.subr.mxu0 0.0
    %v2031 = vand.u32 %v1507, 4294901760
    %v2032 = vsub.f32 %v1507, %v2031
    %v2033 = vand.u32 %v2032, 4294901760
    %2034 = vmatpush1.msra.mxu0 %v2033
    %2035 = vmatprep.subr.mxu0 0.0
    %2036 = vmatpush1.msra.mxu0 0.0
    %2037 = vmatprep.subr.mxu0 0.0
    %2038 = vmatpush1.msra.mxu0 0.0
    %2039 = vmatprep.subr.mxu0 0.0
    %2040 = vmatpush1.msra.mxu0 0.0
    %2041 = vmatprep.subr.mxu0 0.0
    %2042 = vmatpush1.msra.mxu0 0.0
    %2043 = vmatprep.subr.mxu0 0.0
    %2044 = vmatpush1.msra.mxu0 0.0
    %2045 = vmatprep.subr.mxu0 0.0
    %2046 = vmatpush1.msra.mxu0 0.0
    %2047 = vmatprep.subr.mxu0 0.0
    %2048 = vmatpush1.msra.mxu0 0.0
    %2049 = vmatprep.subr.mxu0 0.0
    %2050 = vmatpush1.msra.mxu0 0.0
    %2051 = vmatprep.subr.mxu0 0.0
    %2052 = vmatpush1.msra.mxu0 0.0
    %2053 = vmatprep.subr.mxu0 0.0
    %2054 = vmatpush1.msra.mxu0 0.0
    %2055 = vmatprep.subr.mxu0 0.0
    %2056 = vmatpush1.msra.mxu0 0.0
    %2057 = vmatprep.subr.mxu0 0.0
    %2058 = vmatpush1.msra.mxu0 0.0
    %2059 = vmatprep.subr.mxu0 0.0
    %2060 = vmatpush1.msra.mxu0 0.0
    %2061 = vmatprep.subr.mxu0 0.0
    %2062 = vmatpush1.msra.mxu0 0.0
    %2063 = vmatprep.subr.mxu0 0.0
    %2064 = vmatpush1.msra.mxu0 0.0
    %2065 = vmatprep.subr.mxu0 0.0
    %2066 = vmatpush1.msra.mxu0 0.0
    %2067 = vmatprep.subr.mxu0 0.0
    %2068 = vmatpush1.msra.mxu0 0.0
    %2069 = vmatprep.subr.mxu0 0.0
    %2070 = vmatpush1.msra.mxu0 0.0
    %2071 = vmatprep.subr.mxu0 0.0
    %2072 = vmatpush1.msra.mxu0 0.0
    %2073 = vmatprep.subr.mxu0 0.0
    %2074 = vmatpush1.msra.mxu0 0.0
    %2075 = vmatprep.subr.mxu0 0.0
    %2076 = vmatpush1.msra.mxu0 0.0
    %2077 = vmatprep.subr.mxu0 0.0
    %2078 = vmatpush1.msra.mxu0 0.0
    %2079 = vmatprep.subr.mxu0 0.0
    %2080 = vmatpush1.msra.mxu0 0.0
    %2081 = vmatprep.subr.mxu0 0.0
    %2082 = vmatpush1.msra.mxu0 0.0
    %2083 = vmatprep.subr.mxu0 0.0
    %2084 = vmatpush1.msra.mxu0 0.0
    %2085 = vmatprep.subr.mxu0 0.0
    %2086 = vmatpush1.msra.mxu0 0.0
    %2087 = vmatprep.subr.mxu0 0.0
    %2088 = vmatpush1.msra.mxu0 0.0
    %2089 = vmatprep.subr.mxu0 0.0
    %2090 = vmatpush1.msra.mxu0 0.0
    %2091 = vmatprep.mubr.f32.mxu0 0.0
    %v2092 = vand.u32 %v1516, 4294901760
    %2093 = vmatmul.mubr.f32.gmra.mrb[0].mxu0 %v2092
    %v2094 = vpop.f32.mrb[0].mxu0
    %v2095 = vadd.f32 %v1972, %v2094
    %v2096 = vpop.f32.mrb[0].mxu0
    %2097 = vmatprep.mubr.f32.mxu0 0.0
    %v2098 = vand.u32 %v1519, 4294901760
    %2099 = vmatmul.mubr.f32.gmra.mrb[0].mxu0 %v2098
    %v2100 = vpop.f32.mrb[0].mxu0
    %v2101 = vadd.f32 %v1980, %v2100
    %v2102 = vpop.f32.mrb[0].mxu0
    %2103 = vmatprep.mubr.f32.mxu0 0.0
    %v2104 = vand.u32 %v1522, 4294901760
    %2105 = vmatmul.mubr.f32.gmra.mrb[0].mxu0 %v2104
    %v2106 = vpop.f32.mrb[0].mxu0
    %v2107 = vadd.f32 %v1988, %v2106
    %v2108 = vpop.f32.mrb[0].mxu0
    %2109 = vmatprep.mubr.f32.mxu0 0.0
    %v2110 = vand.u32 %v1525, 4294901760
    %2111 = vmatmul.mubr.f32.gmra.mrb[0].mxu0 %v2110
    %v2112 = vpop.f32.mrb[0].mxu0
    %v2113 = vadd.f32 %v1996, %v2112
    %v2114 = vpop.f32.mrb[0].mxu0
    %2115 = vmatprep.mubr.f32.mxu0 0.0
    %v2116 = vand.u32 %v1528, 4294901760
    %2117 = vmatmul.mubr.f32.gmra.mrb[0].mxu0 %v2116
    %v2118 = vpop.f32.mrb[0].mxu0
    %v2119 = vadd.f32 %v2004, %v2118
    %v2120 = vpop.f32.mrb[0].mxu0
    %2121 = vmatprep.mubr.f32.mxu0 0.0
    %v2122 = vand.u32 %v1531, 4294901760
    %2123 = vmatmul.mubr.f32.gmra.mrb[0].mxu0 %v2122
    %v2124 = vpop.f32.mrb[0].mxu0
    %v2125 = vadd.f32 %v2012, %v2124
    %v2126 = vpop.f32.mrb[0].mxu0
    %2127 = vdwg.mxu0
    %2128 = vmatprep.subr.mxu0 0.0
    %v2129 = vand.u32 %v1504, 4294901760
    %2130 = vmatpush1.msra.mxu0 %v2129
    %2131 = vmatprep.subr.mxu0 0.0
    %v2132 = vand.u32 %v1505, 4294901760
    %2133 = vmatpush1.msra.mxu0 %v2132
    %2134 = vmatprep.subr.mxu0 0.0
    %v2135 = vand.u32 %v1506, 4294901760
    %2136 = vmatpush1.msra.mxu0 %v2135
    %2137 = vmatprep.subr.mxu0 0.0
    %v2138 = vand.u32 %v1507, 4294901760
    %2139 = vmatpush1.msra.mxu0 %v2138
    %2140 = vmatprep.subr.mxu0 0.0
    %2141 = vmatpush1.msra.mxu0 0.0
    %2142 = vmatprep.subr.mxu0 0.0
    %2143 = vmatpush1.msra.mxu0 0.0
    %2144 = vmatprep.subr.mxu0 0.0
    %2145 = vmatpush1.msra.mxu0 0.0
    %2146 = vmatprep.subr.mxu0 0.0
    %2147 = vmatpush1.msra.mxu0 0.0
    %2148 = vmatprep.subr.mxu0 0.0
    %2149 = vmatpush1.msra.mxu0 0.0
    %2150 = vmatprep.subr.mxu0 0.0
    %2151 = vmatpush1.msra.mxu0 0.0
    %2152 = vmatprep.subr.mxu0 0.0
    %2153 = vmatpush1.msra.mxu0 0.0
    %2154 = vmatprep.subr.mxu0 0.0
    %2155 = vmatpush1.msra.mxu0 0.0
    %2156 = vmatprep.subr.mxu0 0.0
    %2157 = vmatpush1.msra.mxu0 0.0
    %2158 = vmatprep.subr.mxu0 0.0
    %2159 = vmatpush1.msra.mxu0 0.0
    %2160 = vmatprep.subr.mxu0 0.0
    %2161 = vmatpush1.msra.mxu0 0.0
    %2162 = vmatprep.subr.mxu0 0.0
    %2163 = vmatpush1.msra.mxu0 0.0
    %2164 = vmatprep.subr.mxu0 0.0
    %2165 = vmatpush1.msra.mxu0 0.0
    %2166 = vmatprep.subr.mxu0 0.0
    %2167 = vmatpush1.msra.mxu0 0.0
    %2168 = vmatprep.subr.mxu0 0.0
    %2169 = vmatpush1.msra.mxu0 0.0
    %2170 = vmatprep.subr.mxu0 0.0
    %2171 = vmatpush1.msra.mxu0 0.0
    %2172 = vmatprep.subr.mxu0 0.0
    %2173 = vmatpush1.msra.mxu0 0.0
    %2174 = vmatprep.subr.mxu0 0.0
    %2175 = vmatpush1.msra.mxu0 0.0
    %2176 = vmatprep.subr.mxu0 0.0
    %2177 = vmatpush1.msra.mxu0 0.0
    %2178 = vmatprep.subr.mxu0 0.0
    %2179 = vmatpush1.msra.mxu0 0.0
    %2180 = vmatprep.subr.mxu0 0.0
    %2181 = vmatpush1.msra.mxu0 0.0
    %2182 = vmatprep.subr.mxu0 0.0
    %2183 = vmatpush1.msra.mxu0 0.0
    %2184 = vmatprep.subr.mxu0 0.0
    %2185 = vmatpush1.msra.mxu0 0.0
    %2186 = vmatprep.subr.mxu0 0.0
    %2187 = vmatpush1.msra.mxu0 0.0
    %2188 = vmatprep.subr.mxu0 0.0
    %2189 = vmatpush1.msra.mxu0 0.0
    %2190 = vmatprep.subr.mxu0 0.0
    %2191 = vmatpush1.msra.mxu0 0.0
    %2192 = vmatprep.subr.mxu0 0.0
    %2193 = vmatpush1.msra.mxu0 0.0
    %2194 = vmatprep.subr.mxu0 0.0
    %2195 = vmatpush1.msra.mxu0 0.0
    %2196 = vmatprep.mubr.f32.mxu0 0.0
    %v2197 = vand.u32 %v1516, 4294901760
    %2198 = vmatmul.mubr.f32.gmra.mrb[0].mxu0 %v2197
    %v2199 = vpop.f32.mrb[0].mxu0
    %v2200 = vadd.f32 %v2095, %v2199
    %v2201 = vpop.f32.mrb[0].mxu0
    %2202 = vmatprep.mubr.f32.mxu0 0.0
    %v2203 = vand.u32 %v1519, 4294901760
    %2204 = vmatmul.mubr.f32.gmra.mrb[0].mxu0 %v2203
    %v2205 = vpop.f32.mrb[0].mxu0
    %v2206 = vadd.f32 %v2101, %v2205
    %v2207 = vpop.f32.mrb[0].mxu0
    %2208 = vmatprep.mubr.f32.mxu0 0.0
    %v2209 = vand.u32 %v1522, 4294901760
    %2210 = vmatmul.mubr.f32.gmra.mrb[0].mxu0 %v2209
    %v2211 = vpop.f32.mrb[0].mxu0
    %v2212 = vadd.f32 %v2107, %v2211
    %v2213 = vpop.f32.mrb[0].mxu0
    %2214 = vmatprep.mubr.f32.mxu0 0.0
    %v2215 = vand.u32 %v1525, 4294901760
    %2216 = vmatmul.mubr.f32.gmra.mrb[0].mxu0 %v2215
    %v2217 = vpop.f32.mrb[0].mxu0
    %v2218 = vadd.f32 %v2113, %v2217
    %v2219 = vpop.f32.mrb[0].mxu0
    %2220 = vmatprep.mubr.f32.mxu0 0.0
    %v2221 = vand.u32 %v1528, 4294901760
    %2222 = vmatmul.mubr.f32.gmra.mrb[0].mxu0 %v2221
    %v2223 = vpop.f32.mrb[0].mxu0
    %v2224 = vadd.f32 %v2119, %v2223
    %v2225 = vpop.f32.mrb[0].mxu0
    %2226 = vmatprep.mubr.f32.mxu0 0.0
    %v2227 = vand.u32 %v1531, 4294901760
    %2228 = vmatmul.mubr.f32.gmra.mrb[0].mxu0 %v2227
    %v2229 = vpop.f32.mrb[0].mxu0
    %v2230 = vadd.f32 %v2125, %v2229
    %v2231 = vpop.f32.mrb[0].mxu0
    %2232 = vdwg.mxu0
    %v2233 = vxor.u32 %v2200, 2147483648
    %v2234 = vxor.u32 %v2206, 2147483648
    %v2235 = vxor.u32 %v2212, 2147483648
    %v2236 = vxor.u32 %v2218, 2147483648
    %v2237 = vxor.u32 %v2224, 2147483648
    %v2238 = vxor.u32 %v2230, 2147483648
    %v2239 = vmul.f32 %v2233, 1.442695
    %v2240 = vpow.pop %v2239
    %v2241 = vmul.f32 %v2234, 1.442695
    %v2242 = vpow.pop %v2241
    %v2243 = vmul.f32 %v2235, 1.442695
    %v2244 = vpow.pop %v2243
    %v2245 = vmul.f32 %v2236, 1.442695
    %v2246 = vpow.pop %v2245
    %v2247 = vmul.f32 %v2237, 1.442695
    %v2248 = vpow.pop %v2247
    %v2249 = vmul.f32 %v2238, 1.442695
    %v2250 = vpow.pop %v2249
    %v2251 = vadd.f32 %v2240, 1.0
    %v2252 = vadd.f32 %v2242, 1.0
    %v2253 = vadd.f32 %v2244, 1.0
    %v2254 = vadd.f32 %v2246, 1.0
    %v2255 = vadd.f32 %v2248, 1.0
    %v2256 = vadd.f32 %v2250, 1.0
    %v2257 = vrcp.pop %v2251
    %v2258 = vmul.f32 1.0, %v2257
    %v2259 = vrcp.pop %v2252
    %v2260 = vmul.f32 1.0, %v2259
    %v2261 = vrcp.pop %v2253
    %v2262 = vmul.f32 1.0, %v2261
    %v2263 = vrcp.pop %v2254
    %v2264 = vmul.f32 1.0, %v2263
    %v2265 = vrcp.pop %v2255
    %v2266 = vmul.f32 1.0, %v2265
    %v2267 = vrcp.pop %v2256
    %v2268 = vmul.f32 1.0, %v2267
    %v2269 = vmul.f32 %v730, %v730
    %v2270 = vmul.f32 %v736, %v736
    %v2271 = vmul.f32 %v742, %v742
    %v2272 = vmul.f32 %v748, %v748
    %v2273 = vmul.f32 %v754, %v754
    %v2274 = vmul.f32 %v760, %v760
    %2281 = vrot.lane.b32.xlu0 %v2269, 69
    %v2282 = vpop.permute.xlu0 %2281
    %2283 = vrot.lane.b32.xlu0 %v2270, 69
    %v2284 = vpop.permute.xlu0 %2283
    %2285 = vrot.lane.b32.xlu0 %v2271, 69
    %v2286 = vpop.permute.xlu0 %2285
    %2287 = vrot.lane.b32.xlu0 %v2272, 69
    %v2288 = vpop.permute.xlu0 %2287
    %2289 = vrot.lane.b32.xlu0 %v2273, 69
    %v2290 = vpop.permute.xlu0 %2289
    %2291 = vrot.lane.b32.xlu0 %v2274, 69
    %v2292 = vpop.permute.xlu0 %2291
    %vm2299 = vcmask 523264
    %v2300 = vsel %vm2299, %v2282, 0.0
    %2301 = vadd.xlane.f32.xlu0 %v2300
    %v2302 = vpop.xlane.xlu0 %2301
    %v2303 = vsel %vm2299, %v2284, 0.0
    %2304 = vadd.xlane.f32.xlu0 %v2303
    %v2305 = vpop.xlane.xlu0 %2304
    %v2306 = vsel %vm2299, %v2286, 0.0
    %2307 = vadd.xlane.f32.xlu0 %v2306
    %v2308 = vpop.xlane.xlu0 %2307
    %v2309 = vsel %vm2299, %v2288, 0.0
    %2310 = vadd.xlane.f32.xlu0 %v2309
    %v2311 = vpop.xlane.xlu0 %2310
    %v2312 = vsel %vm2299, %v2290, 0.0
    %2313 = vadd.xlane.f32.xlu0 %v2312
    %v2314 = vpop.xlane.xlu0 %2313
    %v2315 = vsel %vm2299, %v2292, 0.0
    %2316 = vadd.xlane.f32.xlu0 %v2315
    %v2317 = vpop.xlane.xlu0 %2316
    %v2318 = vmax.f32 %v2302, 1e-24
    %v2319 = vmax.f32 %v2305, 1e-24
    %v2320 = vmax.f32 %v2308, 1e-24
    %v2321 = vmax.f32 %v2311, 1e-24
    %v2322 = vmax.f32 %v2314, 1e-24
    %v2323 = vmax.f32 %v2317, 1e-24
    %v2324 = vrsqrt.pop %v2318
    %v2325 = vrsqrt.pop %v2319
    %v2326 = vrsqrt.pop %v2320
    %v2327 = vrsqrt.pop %v2321
    %v2328 = vrsqrt.pop %v2322
    %v2329 = vrsqrt.pop %v2323
    %v2330 = vmul.f32 %v730, %v2324
    %v2331 = vmul.f32 %v736, %v2325
    %v2332 = vmul.f32 %v742, %v2326
    %v2333 = vmul.f32 %v748, %v2327
    %v2334 = vmul.f32 %v754, %v2328
    %v2335 = vmul.f32 %v760, %v2329
    %2342 = vrot.lane.b32.xlu0 %v730, 96
    %v2343 = vpop.permute.xlu0 %2342
    %2344 = vrot.lane.b32.xlu0 %v736, 96
    %v2345 = vpop.permute.xlu0 %2344
    %2346 = vrot.lane.b32.xlu0 %v742, 96
    %v2347 = vpop.permute.xlu0 %2346
    %2348 = vrot.lane.b32.xlu0 %v748, 96
    %v2349 = vpop.permute.xlu0 %2348
    %2350 = vrot.lane.b32.xlu0 %v754, 96
    %v2351 = vpop.permute.xlu0 %2350
    %2352 = vrot.lane.b32.xlu0 %v760, 96
    %v2353 = vpop.permute.xlu0 %2352
    %vm2360 = vcmask 138240
    %2361 = vst.msk [vmem:[#allocation2] sm:$0xff] %vm2360, %v2343
    %2362 = vst.msk [vmem:[#allocation2 + $0x8] sm:$0xff] %vm2360, %v2345
    %2363 = vst.msk [vmem:[#allocation2 + $0x10] sm:$0xff] %vm2360, %v2347
    %2364 = vst.msk [vmem:[#allocation2 + $0x18] sm:$0xff] %vm2360, %v2349
    %2365 = vst.msk [vmem:[#allocation2 + $0x20] sm:$0xff] %vm2360, %v2351
    %2366 = vst.msk [vmem:[#allocation2 + $0x28] sm:$0xff] %vm2360, %v2353
    %vm2367 = vcmask 220296
    %2368 = vst.msk [vmem:[#allocation2] sm:$0xff] %vm2367, %v2343
    %2369 = vst.msk [vmem:[#allocation2 + $0x8] sm:$0xff] %vm2367, %v2345
    %2370 = vst.msk [vmem:[#allocation2 + $0x10] sm:$0xff] %vm2367, %v2347
    %2371 = vst.msk [vmem:[#allocation2 + $0x18] sm:$0xff] %vm2367, %v2349
    %2372 = vst.msk [vmem:[#allocation2 + $0x20] sm:$0xff] %vm2367, %v2351
    %2373 = vst.msk [vmem:[#allocation2 + $0x28] sm:$0xff] %vm2367, %v2353
    %2380 = vrot.lane.b32.xlu0 %v2258, 27
    %v2381 = vpop.permute.xlu0 %2380
    %2382 = vrot.lane.b32.xlu0 %v2260, 27
    %v2383 = vpop.permute.xlu0 %2382
    %2384 = vrot.lane.b32.xlu0 %v2262, 27
    %v2385 = vpop.permute.xlu0 %2384
    %2386 = vrot.lane.b32.xlu0 %v2264, 27
    %v2387 = vpop.permute.xlu0 %2386
    %2388 = vrot.lane.b32.xlu0 %v2266, 27
    %v2389 = vpop.permute.xlu0 %2388
    %2390 = vrot.lane.b32.xlu0 %v2268, 27
    %v2391 = vpop.permute.xlu0 %2390
    %vm2398 = vcmask 253144
    %2399 = vst.msk [vmem:[#allocation2] sm:$0xff] %vm2398, %v2381
    %2400 = vst.msk [vmem:[#allocation2 + $0x8] sm:$0xff] %vm2398, %v2383
    %2401 = vst.msk [vmem:[#allocation2 + $0x10] sm:$0xff] %vm2398, %v2385
    %2402 = vst.msk [vmem:[#allocation2 + $0x18] sm:$0xff] %vm2398, %v2387
    %2403 = vst.msk [vmem:[#allocation2 + $0x20] sm:$0xff] %vm2398, %v2389
    %2404 = vst.msk [vmem:[#allocation2 + $0x28] sm:$0xff] %vm2398, %v2391
    %2411 = vrot.lane.b32.xlu0 %v2330, 100
    %v2412 = vpop.permute.xlu0 %2411
    %2413 = vrot.lane.b32.xlu0 %v2331, 100
    %v2414 = vpop.permute.xlu0 %2413
    %2415 = vrot.lane.b32.xlu0 %v2332, 100
    %v2416 = vpop.permute.xlu0 %2415
    %2417 = vrot.lane.b32.xlu0 %v2333, 100
    %v2418 = vpop.permute.xlu0 %2417
    %2419 = vrot.lane.b32.xlu0 %v2334, 100
    %v2420 = vpop.permute.xlu0 %2419
    %2421 = vrot.lane.b32.xlu0 %v2335, 100
    %v2422 = vpop.permute.xlu0 %2421
    %vm2429 = vcmask 777464
    %2430 = vst.msk [vmem:[#allocation2] sm:$0xff] %vm2429, %v2412
    %2431 = vst.msk [vmem:[#allocation2 + $0x8] sm:$0xff] %vm2429, %v2414
    %2432 = vst.msk [vmem:[#allocation2 + $0x10] sm:$0xff] %vm2429, %v2416
    %2433 = vst.msk [vmem:[#allocation2 + $0x18] sm:$0xff] %vm2429, %v2418
    %2434 = vst.msk [vmem:[#allocation2 + $0x20] sm:$0xff] %vm2429, %v2420
    %2435 = vst.msk [vmem:[#allocation2 + $0x28] sm:$0xff] %vm2429, %v2422
    %vm2436 = vcmask 1048312
    %2437 = vst.msk [vmem:[#allocation2] sm:$0xff] %vm2436, 0.0
    %2438 = vst.msk [vmem:[#allocation2 + $0x8] sm:$0xff] %vm2436, 0.0
    %2439 = vst.msk [vmem:[#allocation2 + $0x10] sm:$0xff] %vm2436, 0.0
    %2440 = vst.msk [vmem:[#allocation2 + $0x18] sm:$0xff] %vm2436, 0.0
    %2441 = vst.msk [vmem:[#allocation2 + $0x20] sm:$0xff] %vm2436, 0.0
    %2442 = vst.msk [vmem:[#allocation2 + $0x28] sm:$0xff] %vm2436, 0.0
    // Predicated region
    $region30: #{tpu_custom_call.1} parent=1 // pred_check
      _
    $region31: #{tpu_custom_call.1} parent=1 // pred_check_branch
      %2444 = sbr.rel (0) target = $region33
    $region32: #{tpu_custom_call.1} parent=1 // pred_region
      %s2446 = ssub.s32 768, 768
      %2447 = vsyncadd [#allocation3], %s2446
      %s2448 = sshll.u32 [#allocation2], 4
      %s2449 = int_to_ptr.vmem [resolvable:$true] %s2448
      %2454 = dma.vmem_to_hbm [thread:$0]  %s2449, 768, %s7, [#allocation3], 128, 128, 8
    $region33: #{tpu_custom_call.1} parent=1 // pred_fallthru
      _
    // Predicated region
    $region34: #{tpu_custom_call.1} parent=1 // pred_check
      _
    $region35: #{tpu_custom_call.1} parent=1 // pred_check_branch
      %2456 = sbr.rel (0) target = $region37
    $region36: #{tpu_custom_call.1} parent=1 // pred_region
      %2457 = dma.done [#allocation3], 768
    $region37: #{tpu_custom_call.1} parent=1 // pred_fallthru
      _
    %2458 = vsyncpa [#allocation3], 1

</llo_original>
